<compile_context>
chip_gen: v7x
topology: tpu7x:2x2x1
jax: 0.10.0
libtpu: 0.0.40
codegen_flags: <defaults>
</compile_context>

<pallas_src>
import math

import jax
import jax.numpy as jnp
from jax.experimental import pallas as pl
from jax.experimental.pallas import tpu as pltpu

# ---- model hyperparameters (small, consistent with the module) ----
B = 2          # batch
S = 8          # sequence length
H = 32         # hidden_size
NH = 4         # num_attention_heads
DH = H // NH   # attention_head_size
I = 64         # intermediate_size
T = B * S      # flattened token count
LN_EPS = 1e-12


def _layernorm(x, gamma, beta):
    mu = jnp.mean(x, axis=-1, keepdims=True)
    var = jnp.mean((x - mu) ** 2, axis=-1, keepdims=True)
    return (x - mu) * jax.lax.rsqrt(var + LN_EPS) * gamma + beta


def _gelu_exact(x):
    # HF Roberta default hidden_act = 'gelu' (erf form)
    return 0.5 * x * (1.0 + jax.lax.erf(x / jnp.sqrt(2.0).astype(x.dtype)))


def roberta_layer_kernel(x_ref, mask_ref, wpack_ref, wi_ref, wo_ref, vec_ref,
                         out_ref):
    x = x_ref[...]            # (T, H) flattened tokens
    bigmask = mask_ref[...]   # (T, T) additive, block-diagonal over batches
    w_pack = wpack_ref[...]   # (H, 4H) = [Wq | Wk | Wv | Wao]
    vec = vec_ref[...]        # (8, 128) packed biases / LN params

    # unpack the small parameter slab (static lane slices)
    b_qkv = vec[0:1, 0:3 * H]          # (1, 96)  = [bq | bk | bv]
    b_ao = vec[0:1, 3 * H:4 * H]       # (1, 32)
    g1 = vec[1:2, 0:H]
    b1 = vec[1:2, H:2 * H]
    g2 = vec[1:2, 2 * H:3 * H]
    b2 = vec[1:2, 3 * H:4 * H]
    b_i = vec[2:3, 0:I]                # (1, 64)
    b_o = vec[2:3, I:I + H]            # (1, 32)

    # --- fused QKV projection: one (T,H) x (H,3H) MXU matmul ---
    qkv = jnp.dot(x, w_pack[:, 0:3 * H],
                  preferred_element_type=jnp.float32) + b_qkv   # (T, 3H)
    w_ao = w_pack[:, 3 * H:4 * H]                               # (H, H)

    scale = jnp.float32(1.0 / math.sqrt(DH))

    # --- per-head attention over the full (T, T) slab; the block-diagonal
    #     mask keeps the two batches from attending to each other.
    #     TODO(synk): attention_probs dropout omitted (eval mode => identity)
    ctxs = []
    for h in range(NH):
        qh = qkv[:, h * DH:(h + 1) * DH]                 # (T, DH)
        kh = qkv[:, H + h * DH:H + (h + 1) * DH]         # (T, DH)
        vh = qkv[:, 2 * H + h * DH:2 * H + (h + 1) * DH]  # (T, DH)
        s = jnp.dot(qh, kh.T, preferred_element_type=jnp.float32) * scale
        s = s + bigmask                                  # (T, T)
        s = s - jnp.max(s, axis=-1, keepdims=True)
        p = jnp.exp(s)
        p = p * pl.reciprocal(jnp.sum(p, axis=-1, keepdims=True), approx=True)
        ctxs.append(jnp.dot(p, vh, preferred_element_type=jnp.float32))
    ctx = jnp.concatenate(ctxs, axis=-1)                 # (T, H)

    # --- RobertaSelfOutput: dense + residual + LayerNorm ---
    attn = jnp.dot(ctx, w_ao, preferred_element_type=jnp.float32) + b_ao + x
    attn = _layernorm(attn, g1, b1)

    # --- RobertaIntermediate: dense + GELU ---
    inter = _gelu_exact(
        jnp.dot(attn, wi_ref[...], preferred_element_type=jnp.float32) + b_i)

    # --- RobertaOutput: dense + residual + LayerNorm ---
    ffn = jnp.dot(inter, wo_ref[...], preferred_element_type=jnp.float32) + b_o + attn
    out_ref[...] = _layernorm(ffn, g2, b2)


def roberta_layer(x, attn_mask, params):
    """x: (B, S, H) f32, attn_mask: (B, 1, S) additive f32."""
    (wq, bq, wk, bk, wv, bv, wao, bao, g1, b1, wi, bi, wo, bo, g2, b2) = params

    # flatten tokens: (B, S, H) -> (B*S, H)
    x2d = x.reshape(T, H)

    # combined additive mask over flattened tokens: same-batch pairs get the
    # user mask value for that key; cross-batch pairs get -1e9 (block-diag).
    batch_id = jnp.arange(T, dtype=jnp.int32) // S
    same = batch_id[:, None] == batch_id[None, :]
    col_vals = attn_mask[:, 0, :].reshape(T)             # key-side mask values
    bigmask = jnp.where(same, col_vals[None, :],
                        jnp.float32(-1e9)).astype(jnp.float32)   # (T, T)

    # pack the four HxH weights along the lane dim -> (32, 128)
    w_pack = jnp.concatenate([wq, wk, wv, wao], axis=1).astype(jnp.float32)

    # pack biases / LN params into one (8, 128) slab
    vec = jnp.zeros((8, 128), jnp.float32)
    vec = vec.at[0, 0:3 * H].set(
        jnp.concatenate([bq.reshape(-1), bk.reshape(-1), bv.reshape(-1)]))
    vec = vec.at[0, 3 * H:4 * H].set(bao.reshape(-1))
    vec = vec.at[1, 0:H].set(g1.reshape(-1))
    vec = vec.at[1, H:2 * H].set(b1.reshape(-1))
    vec = vec.at[1, 2 * H:3 * H].set(g2.reshape(-1))
    vec = vec.at[1, 3 * H:4 * H].set(b2.reshape(-1))
    vec = vec.at[2, 0:I].set(bi.reshape(-1))
    vec = vec.at[2, I:I + H].set(bo.reshape(-1))

    vmem_spec = pl.BlockSpec(memory_space=pltpu.MemorySpace.VMEM)
    out2d = pl.pallas_call(
        roberta_layer_kernel,
        out_shape=jax.ShapeDtypeStruct((T, H), jnp.float32),
        in_specs=[vmem_spec] * 6,
        out_specs=vmem_spec,
    )(x2d, bigmask, w_pack, wi.astype(jnp.float32), wo.astype(jnp.float32), vec)
    return out2d.reshape(B, S, H)


def roberta_layer_ref(x, attn_mask, params):
    """Pure-JAX reference with identical math for validation."""
    (wq, bq, wk, bk, wv, bv, wao, bao, g1, b1, wi, bi, wo, bo, g2, b2) = params
    q = x @ wq + bq
    k = x @ wk + bk
    v = x @ wv + bv
    qh = q.reshape(B, S, NH, DH).transpose(0, 2, 1, 3)
    kh = k.reshape(B, S, NH, DH).transpose(0, 2, 1, 3)
    vh = v.reshape(B, S, NH, DH).transpose(0, 2, 1, 3)
    s = jnp.einsum('bhqd,bhkd->bhqk', qh, kh) / math.sqrt(DH)
    s = s + attn_mask[:, None, :, :]
    p = jax.nn.softmax(s, axis=-1)
    ctx = jnp.einsum('bhqk,bhkd->bhqd', p, vh).transpose(0, 2, 1, 3).reshape(B, S, H)
    attn = _layernorm(ctx @ wao + bao + x, g1, b1)
    inter = _gelu_exact(attn @ wi + bi)
    return _layernorm(inter @ wo + bo + attn, g2, b2)


def make_params(key):
    ks = jax.random.split(key, 8)
    std = 0.02
    wq = jax.random.normal(ks[0], (H, H), jnp.float32) * std
    wk = jax.random.normal(ks[1], (H, H), jnp.float32) * std
    wv = jax.random.normal(ks[2], (H, H), jnp.float32) * std
    wao = jax.random.normal(ks[3], (H, H), jnp.float32) * std
    wi = jax.random.normal(ks[4], (H, I), jnp.float32) * std
    wo = jax.random.normal(ks[5], (I, H), jnp.float32) * std
    bq = jax.random.normal(ks[6], (1, H), jnp.float32) * std
    bk = jnp.zeros((1, H), jnp.float32)
    bv = jax.random.normal(ks[7], (1, H), jnp.float32) * std
    bao = jnp.zeros((1, H), jnp.float32)
    bi = jnp.zeros((1, I), jnp.float32)
    bo = jnp.zeros((1, H), jnp.float32)
    g1 = jnp.ones((1, H), jnp.float32)
    b1 = jnp.zeros((1, H), jnp.float32)
    g2 = jnp.ones((1, H), jnp.float32)
    b2 = jnp.zeros((1, H), jnp.float32)
    return (wq, bq, wk, bk, wv, bv, wao, bao, g1, b1, wi, bi, wo, bo, g2, b2)


if __name__ == "__main__":
    key = jax.random.PRNGKey(0)
    kx, kp = jax.random.split(key)
    x = jax.random.normal(kx, (B, S, H), jnp.float32)
    # additive attention mask (all positions visible => zeros), shape (B, 1, S)
    attn_mask = jnp.zeros((B, 1, S), jnp.float32)
    params = make_params(kp)

    out = roberta_layer(x, attn_mask, params)
    out = jax.block_until_ready(out)

    ref = roberta_layer_ref(x, attn_mask, params)
    assert out.shape == (B, S, H)
    # tolerance slightly relaxed because softmax uses approx EUP reciprocal
    assert jnp.max(jnp.abs(out - ref)) < 2e-3, "mismatch vs pure-JAX reference"
    print("KERNEL_OK")
</pallas_src>

<mosaic_0001>
module attributes {stable_mosaic.version = 11 : i64} {
  func.func @roberta_layer_kernel(%arg0: memref<16x32xf32, #tpu.memory_space<vmem>>, %arg1: memref<16x16xf32, #tpu.memory_space<vmem>>, %arg2: memref<32x128xf32, #tpu.memory_space<vmem>>, %arg3: memref<32x64xf32, #tpu.memory_space<vmem>>, %arg4: memref<64x32xf32, #tpu.memory_space<vmem>>, %arg5: memref<8x128xf32, #tpu.memory_space<vmem>>, %arg6: memref<16x32xf32, #tpu.memory_space<vmem>>) attributes {dimension_semantics = [], scalar_prefetch = 0 : i64, scratch_operands = 0 : i64, tpu.core_type = #tpu.core_type<tc>} {
    %c0 = arith.constant 0 : index
    %c0_0 = arith.constant 0 : index
    %0 = vector.load %arg0[%c0, %c0_0] : memref<16x32xf32, #tpu.memory_space<vmem>>, vector<16x32xf32>
    %c0_1 = arith.constant 0 : index
    %c0_2 = arith.constant 0 : index
    %1 = vector.load %arg1[%c0_1, %c0_2] : memref<16x16xf32, #tpu.memory_space<vmem>>, vector<16x16xf32>
    %c0_3 = arith.constant 0 : index
    %c0_4 = arith.constant 0 : index
    %2 = vector.load %arg2[%c0_3, %c0_4] : memref<32x128xf32, #tpu.memory_space<vmem>>, vector<32x128xf32>
    %c0_5 = arith.constant 0 : index
    %c0_6 = arith.constant 0 : index
    %3 = vector.load %arg5[%c0_5, %c0_6] : memref<8x128xf32, #tpu.memory_space<vmem>>, vector<8x128xf32>
    %4 = vector.extract_strided_slice %3 {offsets = [0, 0], sizes = [1, 96], strides = [1, 1]} : vector<8x128xf32> to vector<1x96xf32>
    %5 = vector.extract_strided_slice %3 {offsets = [0, 96], sizes = [1, 32], strides = [1, 1]} : vector<8x128xf32> to vector<1x32xf32>
    %6 = vector.extract_strided_slice %3 {offsets = [1, 0], sizes = [1, 32], strides = [1, 1]} : vector<8x128xf32> to vector<1x32xf32>
    %7 = vector.extract_strided_slice %3 {offsets = [1, 32], sizes = [1, 32], strides = [1, 1]} : vector<8x128xf32> to vector<1x32xf32>
    %8 = vector.extract_strided_slice %3 {offsets = [1, 64], sizes = [1, 32], strides = [1, 1]} : vector<8x128xf32> to vector<1x32xf32>
    %9 = vector.extract_strided_slice %3 {offsets = [1, 96], sizes = [1, 32], strides = [1, 1]} : vector<8x128xf32> to vector<1x32xf32>
    %10 = vector.extract_strided_slice %3 {offsets = [2, 0], sizes = [1, 64], strides = [1, 1]} : vector<8x128xf32> to vector<1x64xf32>
    %11 = vector.extract_strided_slice %3 {offsets = [2, 64], sizes = [1, 32], strides = [1, 1]} : vector<8x128xf32> to vector<1x32xf32>
    %12 = vector.extract_strided_slice %2 {offsets = [0, 0], sizes = [32, 96], strides = [1, 1]} : vector<32x128xf32> to vector<32x96xf32>
    %cst = arith.constant dense<0.000000e+00> : vector<16x96xf32>
    %13 = tpu.matmul %0, %12, %cst {dimension_numbers = #tpu.dot_dimension_numbers<[1], [0], [0], [1], [0, 0, 1, 1], [], []>} : vector<16x32xf32>, vector<32x96xf32>, vector<16x96xf32> -> vector<16x96xf32>
    %14 = vector.broadcast %4 : vector<1x96xf32> to vector<16x96xf32>
    %15 = arith.addf %13, %14 : vector<16x96xf32>
    %16 = vector.extract_strided_slice %2 {offsets = [0, 96], sizes = [32, 32], strides = [1, 1]} : vector<32x128xf32> to vector<32x32xf32>
    %17 = vector.extract_strided_slice %15 {offsets = [0, 0], sizes = [16, 8], strides = [1, 1]} : vector<16x96xf32> to vector<16x8xf32>
    %18 = vector.extract_strided_slice %15 {offsets = [0, 32], sizes = [16, 8], strides = [1, 1]} : vector<16x96xf32> to vector<16x8xf32>
    %19 = vector.extract_strided_slice %15 {offsets = [0, 64], sizes = [16, 8], strides = [1, 1]} : vector<16x96xf32> to vector<16x8xf32>
    %20 = tpu.transpose %18, [1, 0] : vector<16x8xf32> -> vector<8x16xf32>
    %cst_7 = arith.constant dense<0.000000e+00> : vector<16x16xf32>
    %21 = tpu.matmul %17, %20, %cst_7 {dimension_numbers = #tpu.dot_dimension_numbers<[1], [0], [0], [1], [0, 0, 1, 1], [], []>} : vector<16x8xf32>, vector<8x16xf32>, vector<16x16xf32> -> vector<16x16xf32>
    %cst_8 = arith.constant 0.353553385 : f32
    %22 = vector.broadcast %cst_8 : f32 to vector<16x16xf32>
    %23 = arith.mulf %21, %22 : vector<16x16xf32>
    %24 = arith.addf %23, %1 : vector<16x16xf32>
    %cst_9 = arith.constant dense<0xFF800000> : vector<16xf32>
    %25 = vector.multi_reduction <maximumf>, %24, %cst_9 [1] : vector<16x16xf32> to vector<16xf32>
    %26 = vector.shape_cast %25 : vector<16xf32> to vector<16x1xf32>
    %27 = vector.broadcast %26 : vector<16x1xf32> to vector<16x16xf32>
    %28 = arith.subf %24, %27 : vector<16x16xf32>
    %29 = math.exp %28 : vector<16x16xf32>
    %cst_10 = arith.constant dense<0.000000e+00> : vector<16xf32>
    %30 = vector.multi_reduction <add>, %29, %cst_10 [1] : vector<16x16xf32> to vector<16xf32>
    %31 = vector.shape_cast %30 : vector<16xf32> to vector<16x1xf32>
    %32 = tpu.reciprocal %31 {approx = true} : vector<16x1xf32> -> vector<16x1xf32>
    %33 = vector.broadcast %32 : vector<16x1xf32> to vector<16x16xf32>
    %34 = arith.mulf %29, %33 : vector<16x16xf32>
    %cst_11 = arith.constant dense<0.000000e+00> : vector<16x8xf32>
    %35 = tpu.matmul %34, %19, %cst_11 {dimension_numbers = #tpu.dot_dimension_numbers<[1], [0], [0], [1], [0, 0, 1, 1], [], []>} : vector<16x16xf32>, vector<16x8xf32>, vector<16x8xf32> -> vector<16x8xf32>
    %36 = vector.extract_strided_slice %15 {offsets = [0, 8], sizes = [16, 8], strides = [1, 1]} : vector<16x96xf32> to vector<16x8xf32>
    %37 = vector.extract_strided_slice %15 {offsets = [0, 40], sizes = [16, 8], strides = [1, 1]} : vector<16x96xf32> to vector<16x8xf32>
    %38 = vector.extract_strided_slice %15 {offsets = [0, 72], sizes = [16, 8], strides = [1, 1]} : vector<16x96xf32> to vector<16x8xf32>
    %39 = tpu.transpose %37, [1, 0] : vector<16x8xf32> -> vector<8x16xf32>
    %cst_12 = arith.constant dense<0.000000e+00> : vector<16x16xf32>
    %40 = tpu.matmul %36, %39, %cst_12 {dimension_numbers = #tpu.dot_dimension_numbers<[1], [0], [0], [1], [0, 0, 1, 1], [], []>} : vector<16x8xf32>, vector<8x16xf32>, vector<16x16xf32> -> vector<16x16xf32>
    %cst_13 = arith.constant 0.353553385 : f32
    %41 = vector.broadcast %cst_13 : f32 to vector<16x16xf32>
    %42 = arith.mulf %40, %41 : vector<16x16xf32>
    %43 = arith.addf %42, %1 : vector<16x16xf32>
    %cst_14 = arith.constant dense<0xFF800000> : vector<16xf32>
    %44 = vector.multi_reduction <maximumf>, %43, %cst_14 [1] : vector<16x16xf32> to vector<16xf32>
    %45 = vector.shape_cast %44 : vector<16xf32> to vector<16x1xf32>
    %46 = vector.broadcast %45 : vector<16x1xf32> to vector<16x16xf32>
    %47 = arith.subf %43, %46 : vector<16x16xf32>
    %48 = math.exp %47 : vector<16x16xf32>
    %cst_15 = arith.constant dense<0.000000e+00> : vector<16xf32>
    %49 = vector.multi_reduction <add>, %48, %cst_15 [1] : vector<16x16xf32> to vector<16xf32>
    %50 = vector.shape_cast %49 : vector<16xf32> to vector<16x1xf32>
    %51 = tpu.reciprocal %50 {approx = true} : vector<16x1xf32> -> vector<16x1xf32>
    %52 = vector.broadcast %51 : vector<16x1xf32> to vector<16x16xf32>
    %53 = arith.mulf %48, %52 : vector<16x16xf32>
    %cst_16 = arith.constant dense<0.000000e+00> : vector<16x8xf32>
    %54 = tpu.matmul %53, %38, %cst_16 {dimension_numbers = #tpu.dot_dimension_numbers<[1], [0], [0], [1], [0, 0, 1, 1], [], []>} : vector<16x16xf32>, vector<16x8xf32>, vector<16x8xf32> -> vector<16x8xf32>
    %55 = vector.extract_strided_slice %15 {offsets = [0, 16], sizes = [16, 8], strides = [1, 1]} : vector<16x96xf32> to vector<16x8xf32>
    %56 = vector.extract_strided_slice %15 {offsets = [0, 48], sizes = [16, 8], strides = [1, 1]} : vector<16x96xf32> to vector<16x8xf32>
    %57 = vector.extract_strided_slice %15 {offsets = [0, 80], sizes = [16, 8], strides = [1, 1]} : vector<16x96xf32> to vector<16x8xf32>
    %58 = tpu.transpose %56, [1, 0] : vector<16x8xf32> -> vector<8x16xf32>
    %cst_17 = arith.constant dense<0.000000e+00> : vector<16x16xf32>
    %59 = tpu.matmul %55, %58, %cst_17 {dimension_numbers = #tpu.dot_dimension_numbers<[1], [0], [0], [1], [0, 0, 1, 1], [], []>} : vector<16x8xf32>, vector<8x16xf32>, vector<16x16xf32> -> vector<16x16xf32>
    %cst_18 = arith.constant 0.353553385 : f32
    %60 = vector.broadcast %cst_18 : f32 to vector<16x16xf32>
    %61 = arith.mulf %59, %60 : vector<16x16xf32>
    %62 = arith.addf %61, %1 : vector<16x16xf32>
    %cst_19 = arith.constant dense<0xFF800000> : vector<16xf32>
    %63 = vector.multi_reduction <maximumf>, %62, %cst_19 [1] : vector<16x16xf32> to vector<16xf32>
    %64 = vector.shape_cast %63 : vector<16xf32> to vector<16x1xf32>
    %65 = vector.broadcast %64 : vector<16x1xf32> to vector<16x16xf32>
    %66 = arith.subf %62, %65 : vector<16x16xf32>
    %67 = math.exp %66 : vector<16x16xf32>
    %cst_20 = arith.constant dense<0.000000e+00> : vector<16xf32>
    %68 = vector.multi_reduction <add>, %67, %cst_20 [1] : vector<16x16xf32> to vector<16xf32>
    %69 = vector.shape_cast %68 : vector<16xf32> to vector<16x1xf32>
    %70 = tpu.reciprocal %69 {approx = true} : vector<16x1xf32> -> vector<16x1xf32>
    %71 = vector.broadcast %70 : vector<16x1xf32> to vector<16x16xf32>
    %72 = arith.mulf %67, %71 : vector<16x16xf32>
    %cst_21 = arith.constant dense<0.000000e+00> : vector<16x8xf32>
    %73 = tpu.matmul %72, %57, %cst_21 {dimension_numbers = #tpu.dot_dimension_numbers<[1], [0], [0], [1], [0, 0, 1, 1], [], []>} : vector<16x16xf32>, vector<16x8xf32>, vector<16x8xf32> -> vector<16x8xf32>
    %74 = vector.extract_strided_slice %15 {offsets = [0, 24], sizes = [16, 8], strides = [1, 1]} : vector<16x96xf32> to vector<16x8xf32>
    %75 = vector.extract_strided_slice %15 {offsets = [0, 56], sizes = [16, 8], strides = [1, 1]} : vector<16x96xf32> to vector<16x8xf32>
    %76 = vector.extract_strided_slice %15 {offsets = [0, 88], sizes = [16, 8], strides = [1, 1]} : vector<16x96xf32> to vector<16x8xf32>
    %77 = tpu.transpose %75, [1, 0] : vector<16x8xf32> -> vector<8x16xf32>
    %cst_22 = arith.constant dense<0.000000e+00> : vector<16x16xf32>
    %78 = tpu.matmul %74, %77, %cst_22 {dimension_numbers = #tpu.dot_dimension_numbers<[1], [0], [0], [1], [0, 0, 1, 1], [], []>} : vector<16x8xf32>, vector<8x16xf32>, vector<16x16xf32> -> vector<16x16xf32>
    %cst_23 = arith.constant 0.353553385 : f32
    %79 = vector.broadcast %cst_23 : f32 to vector<16x16xf32>
    %80 = arith.mulf %78, %79 : vector<16x16xf32>
    %81 = arith.addf %80, %1 : vector<16x16xf32>
    %cst_24 = arith.constant dense<0xFF800000> : vector<16xf32>
    %82 = vector.multi_reduction <maximumf>, %81, %cst_24 [1] : vector<16x16xf32> to vector<16xf32>
    %83 = vector.shape_cast %82 : vector<16xf32> to vector<16x1xf32>
    %84 = vector.broadcast %83 : vector<16x1xf32> to vector<16x16xf32>
    %85 = arith.subf %81, %84 : vector<16x16xf32>
    %86 = math.exp %85 : vector<16x16xf32>
    %cst_25 = arith.constant dense<0.000000e+00> : vector<16xf32>
    %87 = vector.multi_reduction <add>, %86, %cst_25 [1] : vector<16x16xf32> to vector<16xf32>
    %88 = vector.shape_cast %87 : vector<16xf32> to vector<16x1xf32>
    %89 = tpu.reciprocal %88 {approx = true} : vector<16x1xf32> -> vector<16x1xf32>
    %90 = vector.broadcast %89 : vector<16x1xf32> to vector<16x16xf32>
    %91 = arith.mulf %86, %90 : vector<16x16xf32>
    %cst_26 = arith.constant dense<0.000000e+00> : vector<16x8xf32>
    %92 = tpu.matmul %91, %76, %cst_26 {dimension_numbers = #tpu.dot_dimension_numbers<[1], [0], [0], [1], [0, 0, 1, 1], [], []>} : vector<16x16xf32>, vector<16x8xf32>, vector<16x8xf32> -> vector<16x8xf32>
    %93 = tpu.concatenate %35, %54, %73, %92 in 1 : vector<16x8xf32>, vector<16x8xf32>, vector<16x8xf32>, vector<16x8xf32> -> vector<16x32xf32>
    %cst_27 = arith.constant dense<0.000000e+00> : vector<16x32xf32>
    %94 = tpu.matmul %93, %16, %cst_27 {dimension_numbers = #tpu.dot_dimension_numbers<[1], [0], [0], [1], [0, 0, 1, 1], [], []>} : vector<16x32xf32>, vector<32x32xf32>, vector<16x32xf32> -> vector<16x32xf32>
    %95 = vector.broadcast %5 : vector<1x32xf32> to vector<16x32xf32>
    %96 = arith.addf %94, %95 : vector<16x32xf32>
    %97 = arith.addf %96, %0 : vector<16x32xf32>
    %cst_28 = arith.constant dense<0.000000e+00> : vector<16xf32>
    %98 = vector.multi_reduction <add>, %97, %cst_28 [1] : vector<16x32xf32> to vector<16xf32>
    %99 = vector.shape_cast %98 : vector<16xf32> to vector<16x1xf32>
    %cst_29 = arith.constant 3.200000e+01 : f32
    %100 = vector.broadcast %cst_29 : f32 to vector<16x1xf32>
    %101 = arith.divf %99, %100 : vector<16x1xf32>
    %102 = vector.broadcast %101 : vector<16x1xf32> to vector<16x32xf32>
    %103 = arith.subf %97, %102 : vector<16x32xf32>
    %104 = arith.mulf %103, %103 : vector<16x32xf32>
    %cst_30 = arith.constant dense<0.000000e+00> : vector<16xf32>
    %105 = vector.multi_reduction <add>, %104, %cst_30 [1] : vector<16x32xf32> to vector<16xf32>
    %106 = vector.shape_cast %105 : vector<16xf32> to vector<16x1xf32>
    %cst_31 = arith.constant 3.200000e+01 : f32
    %107 = vector.broadcast %cst_31 : f32 to vector<16x1xf32>
    %108 = arith.divf %106, %107 : vector<16x1xf32>
    %109 = vector.broadcast %101 : vector<16x1xf32> to vector<16x32xf32>
    %110 = arith.subf %97, %109 : vector<16x32xf32>
    %cst_32 = arith.constant 9.99999996E-13 : f32
    %111 = vector.broadcast %cst_32 : f32 to vector<16x1xf32>
    %112 = arith.addf %108, %111 : vector<16x1xf32>
    %113 = math.rsqrt %112 : vector<16x1xf32>
    %114 = vector.broadcast %113 : vector<16x1xf32> to vector<16x32xf32>
    %115 = arith.mulf %110, %114 : vector<16x32xf32>
    %116 = vector.broadcast %6 : vector<1x32xf32> to vector<16x32xf32>
    %117 = arith.mulf %115, %116 : vector<16x32xf32>
    %118 = vector.broadcast %7 : vector<1x32xf32> to vector<16x32xf32>
    %119 = arith.addf %117, %118 : vector<16x32xf32>
    %c0_33 = arith.constant 0 : index
    %c0_34 = arith.constant 0 : index
    %120 = vector.load %arg3[%c0_33, %c0_34] : memref<32x64xf32, #tpu.memory_space<vmem>>, vector<32x64xf32>
    %cst_35 = arith.constant dense<0.000000e+00> : vector<16x64xf32>
    %121 = tpu.matmul %119, %120, %cst_35 {dimension_numbers = #tpu.dot_dimension_numbers<[1], [0], [0], [1], [0, 0, 1, 1], [], []>} : vector<16x32xf32>, vector<32x64xf32>, vector<16x64xf32> -> vector<16x64xf32>
    %122 = vector.broadcast %10 : vector<1x64xf32> to vector<16x64xf32>
    %123 = arith.addf %121, %122 : vector<16x64xf32>
    %cst_36 = arith.constant 5.000000e-01 : f32
    %124 = vector.broadcast %cst_36 : f32 to vector<16x64xf32>
    %125 = arith.mulf %124, %123 : vector<16x64xf32>
    %cst_37 = arith.constant 2.000000e+00 : f32
    %126 = math.sqrt %cst_37 : f32
    %127 = vector.broadcast %126 : f32 to vector<16x64xf32>
    %128 = arith.divf %123, %127 : vector<16x64xf32>
    %129 = math.erf %128 : vector<16x64xf32>
    %cst_38 = arith.constant 1.000000e+00 : f32
    %130 = vector.broadcast %cst_38 : f32 to vector<16x64xf32>
    %131 = arith.addf %130, %129 : vector<16x64xf32>
    %132 = arith.mulf %125, %131 : vector<16x64xf32>
    %c0_39 = arith.constant 0 : index
    %c0_40 = arith.constant 0 : index
    %133 = vector.load %arg4[%c0_39, %c0_40] : memref<64x32xf32, #tpu.memory_space<vmem>>, vector<64x32xf32>
    %cst_41 = arith.constant dense<0.000000e+00> : vector<16x32xf32>
    %134 = tpu.matmul %132, %133, %cst_41 {dimension_numbers = #tpu.dot_dimension_numbers<[1], [0], [0], [1], [0, 0, 1, 1], [], []>} : vector<16x64xf32>, vector<64x32xf32>, vector<16x32xf32> -> vector<16x32xf32>
    %135 = vector.broadcast %11 : vector<1x32xf32> to vector<16x32xf32>
    %136 = arith.addf %134, %135 : vector<16x32xf32>
    %137 = arith.addf %136, %119 : vector<16x32xf32>
    %cst_42 = arith.constant dense<0.000000e+00> : vector<16xf32>
    %138 = vector.multi_reduction <add>, %137, %cst_42 [1] : vector<16x32xf32> to vector<16xf32>
    %139 = vector.shape_cast %138 : vector<16xf32> to vector<16x1xf32>
    %cst_43 = arith.constant 3.200000e+01 : f32
    %140 = vector.broadcast %cst_43 : f32 to vector<16x1xf32>
    %141 = arith.divf %139, %140 : vector<16x1xf32>
    %142 = vector.broadcast %141 : vector<16x1xf32> to vector<16x32xf32>
    %143 = arith.subf %137, %142 : vector<16x32xf32>
    %144 = arith.mulf %143, %143 : vector<16x32xf32>
    %cst_44 = arith.constant dense<0.000000e+00> : vector<16xf32>
    %145 = vector.multi_reduction <add>, %144, %cst_44 [1] : vector<16x32xf32> to vector<16xf32>
    %146 = vector.shape_cast %145 : vector<16xf32> to vector<16x1xf32>
    %cst_45 = arith.constant 3.200000e+01 : f32
    %147 = vector.broadcast %cst_45 : f32 to vector<16x1xf32>
    %148 = arith.divf %146, %147 : vector<16x1xf32>
    %149 = vector.broadcast %141 : vector<16x1xf32> to vector<16x32xf32>
    %150 = arith.subf %137, %149 : vector<16x32xf32>
    %cst_46 = arith.constant 9.99999996E-13 : f32
    %151 = vector.broadcast %cst_46 : f32 to vector<16x1xf32>
    %152 = arith.addf %148, %151 : vector<16x1xf32>
    %153 = math.rsqrt %152 : vector<16x1xf32>
    %154 = vector.broadcast %153 : vector<16x1xf32> to vector<16x32xf32>
    %155 = arith.mulf %150, %154 : vector<16x32xf32>
    %156 = vector.broadcast %8 : vector<1x32xf32> to vector<16x32xf32>
    %157 = arith.mulf %155, %156 : vector<16x32xf32>
    %158 = vector.broadcast %9 : vector<1x32xf32> to vector<16x32xf32>
    %159 = arith.addf %157, %158 : vector<16x32xf32>
    %c0_47 = arith.constant 0 : index
    %c0_48 = arith.constant 0 : index
    %160 = vector.load %arg6[%c0_47, %c0_48] : memref<16x32xf32, #tpu.memory_space<vmem>>, vector<16x32xf32>
    tpu.vector_store %arg6[%c0_47, %c0_48], %159 {strides = array<i32>} : memref<16x32xf32, #tpu.memory_space<vmem>>, vector<16x32xf32>,
    return
  }
}

</mosaic_0001>

<llo_original>
// kernel: tpu_custom_call.1
$region0: #{tpu_custom_call.1}
  #allocation0 [shape = 'u32[]', space=smem, size = 0x4, offset = 0x4, fixed_abs, tag = 'smem constant byte address 0x4 - core index']
  #allocation1 [shape = 'u32[144,128]{1,0:T(1,128)}', space=vmem, size = 0x12000, scoped, tag = 'internal scratch']
  %s0 = inlined_call_operand.vmem [shape: f32[16,32], index: 0, kind: input, shape index: {}]
  %s1 = inlined_call_operand.vmem [shape: f32[16,16], index: 1, kind: input, shape index: {}]
  %s2 = inlined_call_operand.vmem [shape: f32[32,128], index: 2, kind: input, shape index: {}]
  %s3 = inlined_call_operand.vmem [shape: f32[32,64], index: 3, kind: input, shape index: {}]
  %s4 = inlined_call_operand.vmem [shape: f32[64,32], index: 4, kind: input, shape index: {}]
  %s5 = inlined_call_operand.vmem [shape: f32[8,128], index: 5, kind: input, shape index: {}]
  %s6 = inlined_call_operand.hbm [shape: f32[16,32], index: 6, kind: output, shape index: {}]
  %s7 = sld [smem:[#allocation0]]
  $region34: #{tpu_custom_call.1} parent=0
    _
  %s9 = ssub.s32 1, %s7
  %s10 = scalar_select 0, %s9, %s7
  $region1: #{tpu_custom_call.1} parent=0
    #allocation2 [shape = 'u8[8192]{0}', space=vmem, size = 0x2000, scoped, tag = 'output window, operand 0, single buffered']
    #allocation3 [shape = 's32[1]{0}', space=sflag, size = 0x4, scoped, tag = 'scoped memory for tpu_custom_call.1']
    %11 = vsyncpa [#allocation3], 0
    // Predicated region
    $region2: #{tpu_custom_call.1} parent=1 // pred_check
      _
    $region3: #{tpu_custom_call.1} parent=1 // pred_check_branch
      %13 = sbr.rel (0) target = $region5
    $region4: #{tpu_custom_call.1} parent=1 // pred_region
      _
    $region5: #{tpu_custom_call.1} parent=1 // pred_fallthru
      _
    // Predicated region
    $region6: #{tpu_custom_call.1} parent=1 // pred_check
      _
    $region7: #{tpu_custom_call.1} parent=1 // pred_check_branch
      %15 = sbr.rel (0) target = $region9
    $region8: #{tpu_custom_call.1} parent=1 // pred_region
      _
    $region9: #{tpu_custom_call.1} parent=1 // pred_fallthru
      _
    // Predicated region
    $region10: #{tpu_custom_call.1} parent=1 // pred_check
      _
    $region11: #{tpu_custom_call.1} parent=1 // pred_check_branch
      %17 = sbr.rel (0) target = $region13
    $region12: #{tpu_custom_call.1} parent=1 // pred_region
      _
    $region13: #{tpu_custom_call.1} parent=1 // pred_fallthru
      _
    // Predicated region
    $region14: #{tpu_custom_call.1} parent=1 // pred_check
      _
    $region15: #{tpu_custom_call.1} parent=1 // pred_check_branch
      %19 = sbr.rel (0) target = $region17
    $region16: #{tpu_custom_call.1} parent=1 // pred_region
      _
    $region17: #{tpu_custom_call.1} parent=1 // pred_fallthru
      _
    // Predicated region
    $region18: #{tpu_custom_call.1} parent=1 // pred_check
      _
    $region19: #{tpu_custom_call.1} parent=1 // pred_check_branch
      %21 = sbr.rel (0) target = $region21
    $region20: #{tpu_custom_call.1} parent=1 // pred_region
      _
    $region21: #{tpu_custom_call.1} parent=1 // pred_fallthru
      _
    // Predicated region
    $region22: #{tpu_custom_call.1} parent=1 // pred_check
      _
    $region23: #{tpu_custom_call.1} parent=1 // pred_check_branch
      %23 = sbr.rel (0) target = $region25
    $region24: #{tpu_custom_call.1} parent=1 // pred_region
      _
    $region25: #{tpu_custom_call.1} parent=1 // pred_fallthru
      _
    %v24 = vld [vmem:[%s0] sm:$0xff]
    %v25 = vld [vmem:[%s0 + $0x8] sm:$0xff]
    %v26 = vld [vmem:[%s1] sm:$0xff]
    %v27 = vld [vmem:[%s1 + $0x8] sm:$0xff]
    %v28 = vld [vmem:[%s2] sm:$0xff]
    %v29 = vld [vmem:[%s2 + $0x8] sm:$0xff]
    %v30 = vld [vmem:[%s2 + $0x10] sm:$0xff]
    %v31 = vld [vmem:[%s2 + $0x18] sm:$0xff]
    %v32 = vld [vmem:[%s5] sm:$0xff]
    %v33 = vlaneseq
    %v34 = vshrl.u32 %v33, 7
    %v35 = vsub.s32 0, %v34
    %v36 = vrot.slane %v32, %v35
    %vm37 = vcmask 261120
    %v39 = vsel %vm37, %v24, 0
    %v42 = vsel %vm37, %v25, 0
    %44 = vmatprep.subr.mxu0 0.0
    %45 = vmatpush1.msra.mxu0 %v28
    %46 = vmatprep.subr.mxu0 0.0
    %47 = vmatpush1.msra.mxu0 %v29
    %48 = vmatprep.subr.mxu0 0.0
    %49 = vmatpush1.msra.mxu0 %v30
    %50 = vmatprep.subr.mxu0 0.0
    %51 = vmatpush1.msra.mxu0 %v31
    %52 = vmatprep.subr.mxu0 0.0
    %53 = vmatpush1.msra.mxu0 0.0
    %54 = vmatprep.subr.mxu0 0.0
    %55 = vmatpush1.msra.mxu0 0.0
    %56 = vmatprep.subr.mxu0 0.0
    %57 = vmatpush1.msra.mxu0 0.0
    %58 = vmatprep.subr.mxu0 0.0
    %59 = vmatpush1.msra.mxu0 0.0
    %60 = vmatprep.subr.mxu0 0.0
    %61 = vmatpush1.msra.mxu0 0.0
    %62 = vmatprep.subr.mxu0 0.0
    %63 = vmatpush1.msra.mxu0 0.0
    %64 = vmatprep.subr.mxu0 0.0
    %65 = vmatpush1.msra.mxu0 0.0
    %66 = vmatprep.subr.mxu0 0.0
    %67 = vmatpush1.msra.mxu0 0.0
    %68 = vmatprep.subr.mxu0 0.0
    %69 = vmatpush1.msra.mxu0 0.0
    %70 = vmatprep.subr.mxu0 0.0
    %71 = vmatpush1.msra.mxu0 0.0
    %72 = vmatprep.subr.mxu0 0.0
    %73 = vmatpush1.msra.mxu0 0.0
    %74 = vmatprep.subr.mxu0 0.0
    %75 = vmatpush1.msra.mxu0 0.0
    %76 = vmatprep.subr.mxu0 0.0
    %77 = vmatpush1.msra.mxu0 0.0
    %78 = vmatprep.subr.mxu0 0.0
    %79 = vmatpush1.msra.mxu0 0.0
    %80 = vmatprep.subr.mxu0 0.0
    %81 = vmatpush1.msra.mxu0 0.0
    %82 = vmatprep.subr.mxu0 0.0
    %83 = vmatpush1.msra.mxu0 0.0
    %84 = vmatprep.subr.mxu0 0.0
    %85 = vmatpush1.msra.mxu0 0.0
    %86 = vmatprep.subr.mxu0 0.0
    %87 = vmatpush1.msra.mxu0 0.0
    %88 = vmatprep.subr.mxu0 0.0
    %89 = vmatpush1.msra.mxu0 0.0
    %90 = vmatprep.subr.mxu0 0.0
    %91 = vmatpush1.msra.mxu0 0.0
    %92 = vmatprep.subr.mxu0 0.0
    %93 = vmatpush1.msra.mxu0 0.0
    %94 = vmatprep.subr.mxu0 0.0
    %95 = vmatpush1.msra.mxu0 0.0
    %96 = vmatprep.subr.mxu0 0.0
    %97 = vmatpush1.msra.mxu0 0.0
    %98 = vmatprep.subr.mxu0 0.0
    %99 = vmatpush1.msra.mxu0 0.0
    %100 = vmatprep.subr.mxu0 0.0
    %101 = vmatpush1.msra.mxu0 0.0
    %102 = vmatprep.subr.mxu0 0.0
    %103 = vmatpush1.msra.mxu0 0.0
    %104 = vmatprep.subr.mxu0 0.0
    %105 = vmatpush1.msra.mxu0 0.0
    %106 = vmatprep.subr.mxu0 0.0
    %107 = vmatpush1.msra.mxu0 0.0
    %108 = vmatprep.mubr.f32.mxu0 0.0
    %109 = vmatmul.mubr.f32.gmra.mrb[0].mxu0 %v39
    %v110 = vpop.f32.mrb[0].mxu0
    %v111 = vadd.f32 %v36, %v110
    %v112 = vpop.f32.mrb[0].mxu0
    %113 = vmatprep.mubr.f32.mxu0 0.0
    %114 = vmatmul.mubr.f32.gmra.mrb[0].mxu0 %v42
    %v115 = vpop.f32.mrb[0].mxu0
    %v116 = vadd.f32 %v36, %v115
    %v117 = vpop.f32.mrb[0].mxu0
    %118 = vdwg.mxu0
    %121 = vrot.lane.b32.xlu0 %v111, 96
    %v122 = vpop.permute.xlu0 %121
    %123 = vrot.lane.b32.xlu0 %v116, 96
    %v124 = vpop.permute.xlu0 %123
    %vm125 = vcmask 64512
    %v126 = vsel %vm125, %v111, 0
    %v128 = vsel %vm125, %v116, 0
    %v130 = vsel %vm125, %v122, 0
    %v132 = vsel %vm125, %v124, 0
    %134 = vmatprep.subr.mxu0 0.0
    %135 = vmatpush1.xpose.msra.mxu0 %v130
    %136 = vmatprep.subr.mxu0 0.0
    %137 = vmatpush1.xpose.msra.mxu0 %v132
    %138 = vmatprep.subr.mxu0 0.0
    %139 = vmatpush1.xpose.msra.mxu0 0.0
    %140 = vmatprep.subr.mxu0 0.0
    %141 = vmatpush1.xpose.msra.mxu0 0.0
    %142 = vmatprep.subr.mxu0 0.0
    %143 = vmatpush1.xpose.msra.mxu0 0.0
    %144 = vmatprep.subr.mxu0 0.0
    %145 = vmatpush1.xpose.msra.mxu0 0.0
    %146 = vmatprep.subr.mxu0 0.0
    %147 = vmatpush1.xpose.msra.mxu0 0.0
    %148 = vmatprep.subr.mxu0 0.0
    %149 = vmatpush1.xpose.msra.mxu0 0.0
    %150 = vmatprep.subr.mxu0 0.0
    %151 = vmatpush1.xpose.msra.mxu0 0.0
    %152 = vmatprep.subr.mxu0 0.0
    %153 = vmatpush1.xpose.msra.mxu0 0.0
    %154 = vmatprep.subr.mxu0 0.0
    %155 = vmatpush1.xpose.msra.mxu0 0.0
    %156 = vmatprep.subr.mxu0 0.0
    %157 = vmatpush1.xpose.msra.mxu0 0.0
    %158 = vmatprep.subr.mxu0 0.0
    %159 = vmatpush1.xpose.msra.mxu0 0.0
    %160 = vmatprep.subr.mxu0 0.0
    %161 = vmatpush1.xpose.msra.mxu0 0.0
    %162 = vmatprep.subr.mxu0 0.0
    %163 = vmatpush1.xpose.msra.mxu0 0.0
    %164 = vmatprep.subr.mxu0 0.0
    %165 = vmatpush1.xpose.msra.mxu0 0.0
    %166 = vmatprep.subr.mxu0 0.0
    %167 = vmatpush1.xpose.msra.mxu0 0.0
    %168 = vmatprep.subr.mxu0 0.0
    %169 = vmatpush1.xpose.msra.mxu0 0.0
    %170 = vmatprep.subr.mxu0 0.0
    %171 = vmatpush1.xpose.msra.mxu0 0.0
    %172 = vmatprep.subr.mxu0 0.0
    %173 = vmatpush1.xpose.msra.mxu0 0.0
    %174 = vmatprep.subr.mxu0 0.0
    %175 = vmatpush1.xpose.msra.mxu0 0.0
    %176 = vmatprep.subr.mxu0 0.0
    %177 = vmatpush1.xpose.msra.mxu0 0.0
    %178 = vmatprep.subr.mxu0 0.0
    %179 = vmatpush1.xpose.msra.mxu0 0.0
    %180 = vmatprep.subr.mxu0 0.0
    %181 = vmatpush1.xpose.msra.mxu0 0.0
    %182 = vmatprep.subr.mxu0 0.0
    %183 = vmatpush1.xpose.msra.mxu0 0.0
    %184 = vmatprep.subr.mxu0 0.0
    %185 = vmatpush1.xpose.msra.mxu0 0.0
    %186 = vmatprep.subr.mxu0 0.0
    %187 = vmatpush1.xpose.msra.mxu0 0.0
    %188 = vmatprep.subr.mxu0 0.0
    %189 = vmatpush1.xpose.msra.mxu0 0.0
    %190 = vmatprep.subr.mxu0 0.0
    %191 = vmatpush1.xpose.msra.mxu0 0.0
    %192 = vmatprep.subr.mxu0 0.0
    %193 = vmatpush1.xpose.msra.mxu0 0.0
    %194 = vmatprep.subr.mxu0 0.0
    %195 = vmatpush1.xpose.msra.mxu0 0.0
    %196 = vmatprep.subr.mxu0 0.0
    %197 = vmatpush1.xpose.msra.mxu0 0.0
    %198 = vmatprep.mubr.f32.mxu0 0.0
    %199 = vmatmul.mubr.f32.gmra.mrb[0].mxu0 %v126
    %v200 = vpop.f32.mrb[0].mxu0
    %v201 = vadd.f32 0.0, %v200
    %v202 = vpop.f32.mrb[0].mxu0
    %203 = vmatprep.mubr.f32.mxu0 0.0
    %204 = vmatmul.mubr.f32.gmra.mrb[0].mxu0 %v128
    %v205 = vpop.f32.mrb[0].mxu0
    %v206 = vadd.f32 0.0, %v205
    %v207 = vpop.f32.mrb[0].mxu0
    %208 = vdwg.mxu0
    %v209 = vmul.f32 %v201, 0.35355338
    %v210 = vmul.f32 %v206, 0.35355338
    %v211 = vadd.f32 %v209, %v26
    %v212 = vadd.f32 %v210, %v27
    %vm213 = vcmask 130048
    %v214 = vsel %vm213, %v211, -inf
    %215 = vmax.xlane.f32.xlu0 %v214
    %v216 = vpop.xlane.xlu0 %215
    %v217 = vsel %vm213, %v212, -inf
    %218 = vmax.xlane.f32.xlu0 %v217
    %v219 = vpop.xlane.xlu0 %218
    %v220 = vsub.f32 %v211, %v216
    %v221 = vsub.f32 %v212, %v219
    %v222 = vmul.f32 %v220, 1.442695
    %v223 = vpow.pop %v222
    %v224 = vmul.f32 %v221, 1.442695
    %v225 = vpow.pop %v224
    %v226 = vsel %vm213, %v223, 0.0
    %227 = vadd.xlane.f32.xlu0 %v226
    %v228 = vpop.xlane.xlu0 %227
    %v229 = vsel %vm213, %v225, 0.0
    %230 = vadd.xlane.f32.xlu0 %v229
    %v231 = vpop.xlane.xlu0 %230
    %v232 = vrcp.pop %v228
    %v233 = vrcp.pop %v231
    %v234 = vmul.f32 %v223, %v232
    %v235 = vmul.f32 %v225, %v233
    %236 = vrot.lane.b32.xlu0 %v111, 64
    %v237 = vpop.permute.xlu0 %236
    %238 = vrot.lane.b32.xlu0 %v116, 64
    %v239 = vpop.permute.xlu0 %238
    %v243 = vsel %vm213, %v234, 0
    %v246 = vsel %vm213, %v235, 0
    %248 = vmatprep.subr.mxu0 0.0
    %249 = vmatpush1.msra.mxu0 %v237
    %250 = vmatprep.subr.mxu0 0.0
    %251 = vmatpush1.msra.mxu0 %v239
    %252 = vmatprep.subr.mxu0 0.0
    %253 = vmatpush1.msra.mxu0 0.0
    %254 = vmatprep.subr.mxu0 0.0
    %255 = vmatpush1.msra.mxu0 0.0
    %256 = vmatprep.subr.mxu0 0.0
    %257 = vmatpush1.msra.mxu0 0.0
    %258 = vmatprep.subr.mxu0 0.0
    %259 = vmatpush1.msra.mxu0 0.0
    %260 = vmatprep.subr.mxu0 0.0
    %261 = vmatpush1.msra.mxu0 0.0
    %262 = vmatprep.subr.mxu0 0.0
    %263 = vmatpush1.msra.mxu0 0.0
    %264 = vmatprep.subr.mxu0 0.0
    %265 = vmatpush1.msra.mxu0 0.0
    %266 = vmatprep.subr.mxu0 0.0
    %267 = vmatpush1.msra.mxu0 0.0
    %268 = vmatprep.subr.mxu0 0.0
    %269 = vmatpush1.msra.mxu0 0.0
    %270 = vmatprep.subr.mxu0 0.0
    %271 = vmatpush1.msra.mxu0 0.0
    %272 = vmatprep.subr.mxu0 0.0
    %273 = vmatpush1.msra.mxu0 0.0
    %274 = vmatprep.subr.mxu0 0.0
    %275 = vmatpush1.msra.mxu0 0.0
    %276 = vmatprep.subr.mxu0 0.0
    %277 = vmatpush1.msra.mxu0 0.0
    %278 = vmatprep.subr.mxu0 0.0
    %279 = vmatpush1.msra.mxu0 0.0
    %280 = vmatprep.subr.mxu0 0.0
    %281 = vmatpush1.msra.mxu0 0.0
    %282 = vmatprep.subr.mxu0 0.0
    %283 = vmatpush1.msra.mxu0 0.0
    %284 = vmatprep.subr.mxu0 0.0
    %285 = vmatpush1.msra.mxu0 0.0
    %286 = vmatprep.subr.mxu0 0.0
    %287 = vmatpush1.msra.mxu0 0.0
    %288 = vmatprep.subr.mxu0 0.0
    %289 = vmatpush1.msra.mxu0 0.0
    %290 = vmatprep.subr.mxu0 0.0
    %291 = vmatpush1.msra.mxu0 0.0
    %292 = vmatprep.subr.mxu0 0.0
    %293 = vmatpush1.msra.mxu0 0.0
    %294 = vmatprep.subr.mxu0 0.0
    %295 = vmatpush1.msra.mxu0 0.0
    %296 = vmatprep.subr.mxu0 0.0
    %297 = vmatpush1.msra.mxu0 0.0
    %298 = vmatprep.subr.mxu0 0.0
    %299 = vmatpush1.msra.mxu0 0.0
    %300 = vmatprep.subr.mxu0 0.0
    %301 = vmatpush1.msra.mxu0 0.0
    %302 = vmatprep.subr.mxu0 0.0
    %303 = vmatpush1.msra.mxu0 0.0
    %304 = vmatprep.subr.mxu0 0.0
    %305 = vmatpush1.msra.mxu0 0.0
    %306 = vmatprep.subr.mxu0 0.0
    %307 = vmatpush1.msra.mxu0 0.0
    %308 = vmatprep.subr.mxu0 0.0
    %309 = vmatpush1.msra.mxu0 0.0
    %310 = vmatprep.subr.mxu0 0.0
    %311 = vmatpush1.msra.mxu0 0.0
    %312 = vmatprep.mubr.f32.mxu0 0.0
    %313 = vmatmul.mubr.f32.gmra.mrb[0].mxu0 %v243
    %v314 = vpop.f32.mrb[0].mxu0
    %v315 = vadd.f32 0.0, %v314
    %v316 = vpop.f32.mrb[0].mxu0
    %317 = vmatprep.mubr.f32.mxu0 0.0
    %318 = vmatmul.mubr.f32.gmra.mrb[0].mxu0 %v246
    %v319 = vpop.f32.mrb[0].mxu0
    %v320 = vadd.f32 0.0, %v319
    %v321 = vpop.f32.mrb[0].mxu0
    %322 = vdwg.mxu0
    %323 = vrot.lane.b32.xlu0 %v111, 120
    %v324 = vpop.permute.xlu0 %323
    %325 = vrot.lane.b32.xlu0 %v116, 120
    %v326 = vpop.permute.xlu0 %325
    %327 = vrot.lane.b32.xlu0 %v111, 88
    %v328 = vpop.permute.xlu0 %327
    %329 = vrot.lane.b32.xlu0 %v116, 88
    %v330 = vpop.permute.xlu0 %329
    %v331 = vsel %vm125, %v324, 0
    %v333 = vsel %vm125, %v326, 0
    %v335 = vsel %vm125, %v328, 0
    %v337 = vsel %vm125, %v330, 0
    %339 = vmatprep.subr.mxu0 0.0
    %340 = vmatpush1.xpose.msra.mxu0 %v335
    %341 = vmatprep.subr.mxu0 0.0
    %342 = vmatpush1.xpose.msra.mxu0 %v337
    %343 = vmatprep.subr.mxu0 0.0
    %344 = vmatpush1.xpose.msra.mxu0 0.0
    %345 = vmatprep.subr.mxu0 0.0
    %346 = vmatpush1.xpose.msra.mxu0 0.0
    %347 = vmatprep.subr.mxu0 0.0
    %348 = vmatpush1.xpose.msra.mxu0 0.0
    %349 = vmatprep.subr.mxu0 0.0
    %350 = vmatpush1.xpose.msra.mxu0 0.0
    %351 = vmatprep.subr.mxu0 0.0
    %352 = vmatpush1.xpose.msra.mxu0 0.0
    %353 = vmatprep.subr.mxu0 0.0
    %354 = vmatpush1.xpose.msra.mxu0 0.0
    %355 = vmatprep.subr.mxu0 0.0
    %356 = vmatpush1.xpose.msra.mxu0 0.0
    %357 = vmatprep.subr.mxu0 0.0
    %358 = vmatpush1.xpose.msra.mxu0 0.0
    %359 = vmatprep.subr.mxu0 0.0
    %360 = vmatpush1.xpose.msra.mxu0 0.0
    %361 = vmatprep.subr.mxu0 0.0
    %362 = vmatpush1.xpose.msra.mxu0 0.0
    %363 = vmatprep.subr.mxu0 0.0
    %364 = vmatpush1.xpose.msra.mxu0 0.0
    %365 = vmatprep.subr.mxu0 0.0
    %366 = vmatpush1.xpose.msra.mxu0 0.0
    %367 = vmatprep.subr.mxu0 0.0
    %368 = vmatpush1.xpose.msra.mxu0 0.0
    %369 = vmatprep.subr.mxu0 0.0
    %370 = vmatpush1.xpose.msra.mxu0 0.0
    %371 = vmatprep.subr.mxu0 0.0
    %372 = vmatpush1.xpose.msra.mxu0 0.0
    %373 = vmatprep.subr.mxu0 0.0
    %374 = vmatpush1.xpose.msra.mxu0 0.0
    %375 = vmatprep.subr.mxu0 0.0
    %376 = vmatpush1.xpose.msra.mxu0 0.0
    %377 = vmatprep.subr.mxu0 0.0
    %378 = vmatpush1.xpose.msra.mxu0 0.0
    %379 = vmatprep.subr.mxu0 0.0
    %380 = vmatpush1.xpose.msra.mxu0 0.0
    %381 = vmatprep.subr.mxu0 0.0
    %382 = vmatpush1.xpose.msra.mxu0 0.0
    %383 = vmatprep.subr.mxu0 0.0
    %384 = vmatpush1.xpose.msra.mxu0 0.0
    %385 = vmatprep.subr.mxu0 0.0
    %386 = vmatpush1.xpose.msra.mxu0 0.0
    %387 = vmatprep.subr.mxu0 0.0
    %388 = vmatpush1.xpose.msra.mxu0 0.0
    %389 = vmatprep.subr.mxu0 0.0
    %390 = vmatpush1.xpose.msra.mxu0 0.0
    %391 = vmatprep.subr.mxu0 0.0
    %392 = vmatpush1.xpose.msra.mxu0 0.0
    %393 = vmatprep.subr.mxu0 0.0
    %394 = vmatpush1.xpose.msra.mxu0 0.0
    %395 = vmatprep.subr.mxu0 0.0
    %396 = vmatpush1.xpose.msra.mxu0 0.0
    %397 = vmatprep.subr.mxu0 0.0
    %398 = vmatpush1.xpose.msra.mxu0 0.0
    %399 = vmatprep.subr.mxu0 0.0
    %400 = vmatpush1.xpose.msra.mxu0 0.0
    %401 = vmatprep.subr.mxu0 0.0
    %402 = vmatpush1.xpose.msra.mxu0 0.0
    %403 = vmatprep.mubr.f32.mxu0 0.0
    %404 = vmatmul.mubr.f32.gmra.mrb[0].mxu0 %v331
    %v405 = vpop.f32.mrb[0].mxu0
    %v406 = vadd.f32 0.0, %v405
    %v407 = vpop.f32.mrb[0].mxu0
    %408 = vmatprep.mubr.f32.mxu0 0.0
    %409 = vmatmul.mubr.f32.gmra.mrb[0].mxu0 %v333
    %v410 = vpop.f32.mrb[0].mxu0
    %v411 = vadd.f32 0.0, %v410
    %v412 = vpop.f32.mrb[0].mxu0
    %413 = vdwg.mxu0
    %v414 = vmul.f32 %v406, 0.35355338
    %v415 = vmul.f32 %v411, 0.35355338
    %v416 = vadd.f32 %v414, %v26
    %v417 = vadd.f32 %v415, %v27
    %v418 = vsel %vm213, %v416, -inf
    %419 = vmax.xlane.f32.xlu0 %v418
    %v420 = vpop.xlane.xlu0 %419
    %v421 = vsel %vm213, %v417, -inf
    %422 = vmax.xlane.f32.xlu0 %v421
    %v423 = vpop.xlane.xlu0 %422
    %v424 = vsub.f32 %v416, %v420
    %v425 = vsub.f32 %v417, %v423
    %v426 = vmul.f32 %v424, 1.442695
    %v427 = vpow.pop %v426
    %v428 = vmul.f32 %v425, 1.442695
    %v429 = vpow.pop %v428
    %v430 = vsel %vm213, %v427, 0.0
    %431 = vadd.xlane.f32.xlu0 %v430
    %v432 = vpop.xlane.xlu0 %431
    %v433 = vsel %vm213, %v429, 0.0
    %434 = vadd.xlane.f32.xlu0 %v433
    %v435 = vpop.xlane.xlu0 %434
    %v436 = vrcp.pop %v432
    %v437 = vrcp.pop %v435
    %v438 = vmul.f32 %v427, %v436
    %v439 = vmul.f32 %v429, %v437
    %440 = vrot.lane.b32.xlu0 %v111, 56
    %v441 = vpop.permute.xlu0 %440
    %442 = vrot.lane.b32.xlu0 %v116, 56
    %v443 = vpop.permute.xlu0 %442
    %v447 = vsel %vm213, %v438, 0
    %v450 = vsel %vm213, %v439, 0
    %452 = vmatprep.subr.mxu0 0.0
    %453 = vmatpush1.msra.mxu0 %v441
    %454 = vmatprep.subr.mxu0 0.0
    %455 = vmatpush1.msra.mxu0 %v443
    %456 = vmatprep.subr.mxu0 0.0
    %457 = vmatpush1.msra.mxu0 0.0
    %458 = vmatprep.subr.mxu0 0.0
    %459 = vmatpush1.msra.mxu0 0.0
    %460 = vmatprep.subr.mxu0 0.0
    %461 = vmatpush1.msra.mxu0 0.0
    %462 = vmatprep.subr.mxu0 0.0
    %463 = vmatpush1.msra.mxu0 0.0
    %464 = vmatprep.subr.mxu0 0.0
    %465 = vmatpush1.msra.mxu0 0.0
    %466 = vmatprep.subr.mxu0 0.0
    %467 = vmatpush1.msra.mxu0 0.0
    %468 = vmatprep.subr.mxu0 0.0
    %469 = vmatpush1.msra.mxu0 0.0
    %470 = vmatprep.subr.mxu0 0.0
    %471 = vmatpush1.msra.mxu0 0.0
    %472 = vmatprep.subr.mxu0 0.0
    %473 = vmatpush1.msra.mxu0 0.0
    %474 = vmatprep.subr.mxu0 0.0
    %475 = vmatpush1.msra.mxu0 0.0
    %476 = vmatprep.subr.mxu0 0.0
    %477 = vmatpush1.msra.mxu0 0.0
    %478 = vmatprep.subr.mxu0 0.0
    %479 = vmatpush1.msra.mxu0 0.0
    %480 = vmatprep.subr.mxu0 0.0
    %481 = vmatpush1.msra.mxu0 0.0
    %482 = vmatprep.subr.mxu0 0.0
    %483 = vmatpush1.msra.mxu0 0.0
    %484 = vmatprep.subr.mxu0 0.0
    %485 = vmatpush1.msra.mxu0 0.0
    %486 = vmatprep.subr.mxu0 0.0
    %487 = vmatpush1.msra.mxu0 0.0
    %488 = vmatprep.subr.mxu0 0.0
    %489 = vmatpush1.msra.mxu0 0.0
    %490 = vmatprep.subr.mxu0 0.0
    %491 = vmatpush1.msra.mxu0 0.0
    %492 = vmatprep.subr.mxu0 0.0
    %493 = vmatpush1.msra.mxu0 0.0
    %494 = vmatprep.subr.mxu0 0.0
    %495 = vmatpush1.msra.mxu0 0.0
    %496 = vmatprep.subr.mxu0 0.0
    %497 = vmatpush1.msra.mxu0 0.0
    %498 = vmatprep.subr.mxu0 0.0
    %499 = vmatpush1.msra.mxu0 0.0
    %500 = vmatprep.subr.mxu0 0.0
    %501 = vmatpush1.msra.mxu0 0.0
    %502 = vmatprep.subr.mxu0 0.0
    %503 = vmatpush1.msra.mxu0 0.0
    %504 = vmatprep.subr.mxu0 0.0
    %505 = vmatpush1.msra.mxu0 0.0
    %506 = vmatprep.subr.mxu0 0.0
    %507 = vmatpush1.msra.mxu0 0.0
    %508 = vmatprep.subr.mxu0 0.0
    %509 = vmatpush1.msra.mxu0 0.0
    %510 = vmatprep.subr.mxu0 0.0
    %511 = vmatpush1.msra.mxu0 0.0
    %512 = vmatprep.subr.mxu0 0.0
    %513 = vmatpush1.msra.mxu0 0.0
    %514 = vmatprep.subr.mxu0 0.0
    %515 = vmatpush1.msra.mxu0 0.0
    %516 = vmatprep.mubr.f32.mxu0 0.0
    %517 = vmatmul.mubr.f32.gmra.mrb[0].mxu0 %v447
    %v518 = vpop.f32.mrb[0].mxu0
    %v519 = vadd.f32 0.0, %v518
    %v520 = vpop.f32.mrb[0].mxu0
    %521 = vmatprep.mubr.f32.mxu0 0.0
    %522 = vmatmul.mubr.f32.gmra.mrb[0].mxu0 %v450
    %v523 = vpop.f32.mrb[0].mxu0
    %v524 = vadd.f32 0.0, %v523
    %v525 = vpop.f32.mrb[0].mxu0
    %526 = vdwg.mxu0
    %527 = vrot.lane.b32.xlu0 %v111, 112
    %v528 = vpop.permute.xlu0 %527
    %529 = vrot.lane.b32.xlu0 %v116, 112
    %v530 = vpop.permute.xlu0 %529
    %531 = vrot.lane.b32.xlu0 %v111, 80
    %v532 = vpop.permute.xlu0 %531
    %533 = vrot.lane.b32.xlu0 %v116, 80
    %v534 = vpop.permute.xlu0 %533
    %v535 = vsel %vm125, %v528, 0
    %v537 = vsel %vm125, %v530, 0
    %v539 = vsel %vm125, %v532, 0
    %v541 = vsel %vm125, %v534, 0
    %543 = vmatprep.subr.mxu0 0.0
    %544 = vmatpush1.xpose.msra.mxu0 %v539
    %545 = vmatprep.subr.mxu0 0.0
    %546 = vmatpush1.xpose.msra.mxu0 %v541
    %547 = vmatprep.subr.mxu0 0.0
    %548 = vmatpush1.xpose.msra.mxu0 0.0
    %549 = vmatprep.subr.mxu0 0.0
    %550 = vmatpush1.xpose.msra.mxu0 0.0
    %551 = vmatprep.subr.mxu0 0.0
    %552 = vmatpush1.xpose.msra.mxu0 0.0
    %553 = vmatprep.subr.mxu0 0.0
    %554 = vmatpush1.xpose.msra.mxu0 0.0
    %555 = vmatprep.subr.mxu0 0.0
    %556 = vmatpush1.xpose.msra.mxu0 0.0
    %557 = vmatprep.subr.mxu0 0.0
    %558 = vmatpush1.xpose.msra.mxu0 0.0
    %559 = vmatprep.subr.mxu0 0.0
    %560 = vmatpush1.xpose.msra.mxu0 0.0
    %561 = vmatprep.subr.mxu0 0.0
    %562 = vmatpush1.xpose.msra.mxu0 0.0
    %563 = vmatprep.subr.mxu0 0.0
    %564 = vmatpush1.xpose.msra.mxu0 0.0
    %565 = vmatprep.subr.mxu0 0.0
    %566 = vmatpush1.xpose.msra.mxu0 0.0
    %567 = vmatprep.subr.mxu0 0.0
    %568 = vmatpush1.xpose.msra.mxu0 0.0
    %569 = vmatprep.subr.mxu0 0.0
    %570 = vmatpush1.xpose.msra.mxu0 0.0
    %571 = vmatprep.subr.mxu0 0.0
    %572 = vmatpush1.xpose.msra.mxu0 0.0
    %573 = vmatprep.subr.mxu0 0.0
    %574 = vmatpush1.xpose.msra.mxu0 0.0
    %575 = vmatprep.subr.mxu0 0.0
    %576 = vmatpush1.xpose.msra.mxu0 0.0
    %577 = vmatprep.subr.mxu0 0.0
    %578 = vmatpush1.xpose.msra.mxu0 0.0
    %579 = vmatprep.subr.mxu0 0.0
    %580 = vmatpush1.xpose.msra.mxu0 0.0
    %581 = vmatprep.subr.mxu0 0.0
    %582 = vmatpush1.xpose.msra.mxu0 0.0
    %583 = vmatprep.subr.mxu0 0.0
    %584 = vmatpush1.xpose.msra.mxu0 0.0
    %585 = vmatprep.subr.mxu0 0.0
    %586 = vmatpush1.xpose.msra.mxu0 0.0
    %587 = vmatprep.subr.mxu0 0.0
    %588 = vmatpush1.xpose.msra.mxu0 0.0
    %589 = vmatprep.subr.mxu0 0.0
    %590 = vmatpush1.xpose.msra.mxu0 0.0
    %591 = vmatprep.subr.mxu0 0.0
    %592 = vmatpush1.xpose.msra.mxu0 0.0
    %593 = vmatprep.subr.mxu0 0.0
    %594 = vmatpush1.xpose.msra.mxu0 0.0
    %595 = vmatprep.subr.mxu0 0.0
    %596 = vmatpush1.xpose.msra.mxu0 0.0
    %597 = vmatprep.subr.mxu0 0.0
    %598 = vmatpush1.xpose.msra.mxu0 0.0
    %599 = vmatprep.subr.mxu0 0.0
    %600 = vmatpush1.xpose.msra.mxu0 0.0
    %601 = vmatprep.subr.mxu0 0.0
    %602 = vmatpush1.xpose.msra.mxu0 0.0
    %603 = vmatprep.subr.mxu0 0.0
    %604 = vmatpush1.xpose.msra.mxu0 0.0
    %605 = vmatprep.subr.mxu0 0.0
    %606 = vmatpush1.xpose.msra.mxu0 0.0
    %607 = vmatprep.mubr.f32.mxu0 0.0
    %608 = vmatmul.mubr.f32.gmra.mrb[0].mxu0 %v535
    %v609 = vpop.f32.mrb[0].mxu0
    %v610 = vadd.f32 0.0, %v609
    %v611 = vpop.f32.mrb[0].mxu0
    %612 = vmatprep.mubr.f32.mxu0 0.0
    %613 = vmatmul.mubr.f32.gmra.mrb[0].mxu0 %v537
    %v614 = vpop.f32.mrb[0].mxu0
    %v615 = vadd.f32 0.0, %v614
    %v616 = vpop.f32.mrb[0].mxu0
    %617 = vdwg.mxu0
    %v618 = vmul.f32 %v610, 0.35355338
    %v619 = vmul.f32 %v615, 0.35355338
    %v620 = vadd.f32 %v618, %v26
    %v621 = vadd.f32 %v619, %v27
    %v622 = vsel %vm213, %v620, -inf
    %623 = vmax.xlane.f32.xlu0 %v622
    %v624 = vpop.xlane.xlu0 %623
    %v625 = vsel %vm213, %v621, -inf
    %626 = vmax.xlane.f32.xlu0 %v625
    %v627 = vpop.xlane.xlu0 %626
    %v628 = vsub.f32 %v620, %v624
    %v629 = vsub.f32 %v621, %v627
    %v630 = vmul.f32 %v628, 1.442695
    %v631 = vpow.pop %v630
    %v632 = vmul.f32 %v629, 1.442695
    %v633 = vpow.pop %v632
    %v634 = vsel %vm213, %v631, 0.0
    %635 = vadd.xlane.f32.xlu0 %v634
    %v636 = vpop.xlane.xlu0 %635
    %v637 = vsel %vm213, %v633, 0.0
    %638 = vadd.xlane.f32.xlu0 %v637
    %v639 = vpop.xlane.xlu0 %638
    %v640 = vrcp.pop %v636
    %v641 = vrcp.pop %v639
    %v642 = vmul.f32 %v631, %v640
    %v643 = vmul.f32 %v633, %v641
    %644 = vrot.lane.b32.xlu0 %v111, 48
    %v645 = vpop.permute.xlu0 %644
    %646 = vrot.lane.b32.xlu0 %v116, 48
    %v647 = vpop.permute.xlu0 %646
    %v651 = vsel %vm213, %v642, 0
    %v654 = vsel %vm213, %v643, 0
    %656 = vmatprep.subr.mxu0 0.0
    %657 = vmatpush1.msra.mxu0 %v645
    %658 = vmatprep.subr.mxu0 0.0
    %659 = vmatpush1.msra.mxu0 %v647
    %660 = vmatprep.subr.mxu0 0.0
    %661 = vmatpush1.msra.mxu0 0.0
    %662 = vmatprep.subr.mxu0 0.0
    %663 = vmatpush1.msra.mxu0 0.0
    %664 = vmatprep.subr.mxu0 0.0
    %665 = vmatpush1.msra.mxu0 0.0
    %666 = vmatprep.subr.mxu0 0.0
    %667 = vmatpush1.msra.mxu0 0.0
    %668 = vmatprep.subr.mxu0 0.0
    %669 = vmatpush1.msra.mxu0 0.0
    %670 = vmatprep.subr.mxu0 0.0
    %671 = vmatpush1.msra.mxu0 0.0
    %672 = vmatprep.subr.mxu0 0.0
    %673 = vmatpush1.msra.mxu0 0.0
    %674 = vmatprep.subr.mxu0 0.0
    %675 = vmatpush1.msra.mxu0 0.0
    %676 = vmatprep.subr.mxu0 0.0
    %677 = vmatpush1.msra.mxu0 0.0
    %678 = vmatprep.subr.mxu0 0.0
    %679 = vmatpush1.msra.mxu0 0.0
    %680 = vmatprep.subr.mxu0 0.0
    %681 = vmatpush1.msra.mxu0 0.0
    %682 = vmatprep.subr.mxu0 0.0
    %683 = vmatpush1.msra.mxu0 0.0
    %684 = vmatprep.subr.mxu0 0.0
    %685 = vmatpush1.msra.mxu0 0.0
    %686 = vmatprep.subr.mxu0 0.0
    %687 = vmatpush1.msra.mxu0 0.0
    %688 = vmatprep.subr.mxu0 0.0
    %689 = vmatpush1.msra.mxu0 0.0
    %690 = vmatprep.subr.mxu0 0.0
    %691 = vmatpush1.msra.mxu0 0.0
    %692 = vmatprep.subr.mxu0 0.0
    %693 = vmatpush1.msra.mxu0 0.0
    %694 = vmatprep.subr.mxu0 0.0
    %695 = vmatpush1.msra.mxu0 0.0
    %696 = vmatprep.subr.mxu0 0.0
    %697 = vmatpush1.msra.mxu0 0.0
    %698 = vmatprep.subr.mxu0 0.0
    %699 = vmatpush1.msra.mxu0 0.0
    %700 = vmatprep.subr.mxu0 0.0
    %701 = vmatpush1.msra.mxu0 0.0
    %702 = vmatprep.subr.mxu0 0.0
    %703 = vmatpush1.msra.mxu0 0.0
    %704 = vmatprep.subr.mxu0 0.0
    %705 = vmatpush1.msra.mxu0 0.0
    %706 = vmatprep.subr.mxu0 0.0
    %707 = vmatpush1.msra.mxu0 0.0
    %708 = vmatprep.subr.mxu0 0.0
    %709 = vmatpush1.msra.mxu0 0.0
    %710 = vmatprep.subr.mxu0 0.0
    %711 = vmatpush1.msra.mxu0 0.0
    %712 = vmatprep.subr.mxu0 0.0
    %713 = vmatpush1.msra.mxu0 0.0
    %714 = vmatprep.subr.mxu0 0.0
    %715 = vmatpush1.msra.mxu0 0.0
    %716 = vmatprep.subr.mxu0 0.0
    %717 = vmatpush1.msra.mxu0 0.0
    %718 = vmatprep.subr.mxu0 0.0
    %719 = vmatpush1.msra.mxu0 0.0
    %720 = vmatprep.mubr.f32.mxu0 0.0
    %721 = vmatmul.mubr.f32.gmra.mrb[0].mxu0 %v651
    %v722 = vpop.f32.mrb[0].mxu0
    %v723 = vadd.f32 0.0, %v722
    %v724 = vpop.f32.mrb[0].mxu0
    %725 = vmatprep.mubr.f32.mxu0 0.0
    %726 = vmatmul.mubr.f32.gmra.mrb[0].mxu0 %v654
    %v727 = vpop.f32.mrb[0].mxu0
    %v728 = vadd.f32 0.0, %v727
    %v729 = vpop.f32.mrb[0].mxu0
    %730 = vdwg.mxu0
    %731 = vrot.lane.b32.xlu0 %v111, 104
    %v732 = vpop.permute.xlu0 %731
    %733 = vrot.lane.b32.xlu0 %v116, 104
    %v734 = vpop.permute.xlu0 %733
    %735 = vrot.lane.b32.xlu0 %v111, 72
    %v736 = vpop.permute.xlu0 %735
    %737 = vrot.lane.b32.xlu0 %v116, 72
    %v738 = vpop.permute.xlu0 %737
    %v739 = vsel %vm125, %v732, 0
    %v741 = vsel %vm125, %v734, 0
    %v743 = vsel %vm125, %v736, 0
    %v745 = vsel %vm125, %v738, 0
    %747 = vmatprep.subr.mxu0 0.0
    %748 = vmatpush1.xpose.msra.mxu0 %v743
    %749 = vmatprep.subr.mxu0 0.0
    %750 = vmatpush1.xpose.msra.mxu0 %v745
    %751 = vmatprep.subr.mxu0 0.0
    %752 = vmatpush1.xpose.msra.mxu0 0.0
    %753 = vmatprep.subr.mxu0 0.0
    %754 = vmatpush1.xpose.msra.mxu0 0.0
    %755 = vmatprep.subr.mxu0 0.0
    %756 = vmatpush1.xpose.msra.mxu0 0.0
    %757 = vmatprep.subr.mxu0 0.0
    %758 = vmatpush1.xpose.msra.mxu0 0.0
    %759 = vmatprep.subr.mxu0 0.0
    %760 = vmatpush1.xpose.msra.mxu0 0.0
    %761 = vmatprep.subr.mxu0 0.0
    %762 = vmatpush1.xpose.msra.mxu0 0.0
    %763 = vmatprep.subr.mxu0 0.0
    %764 = vmatpush1.xpose.msra.mxu0 0.0
    %765 = vmatprep.subr.mxu0 0.0
    %766 = vmatpush1.xpose.msra.mxu0 0.0
    %767 = vmatprep.subr.mxu0 0.0
    %768 = vmatpush1.xpose.msra.mxu0 0.0
    %769 = vmatprep.subr.mxu0 0.0
    %770 = vmatpush1.xpose.msra.mxu0 0.0
    %771 = vmatprep.subr.mxu0 0.0
    %772 = vmatpush1.xpose.msra.mxu0 0.0
    %773 = vmatprep.subr.mxu0 0.0
    %774 = vmatpush1.xpose.msra.mxu0 0.0
    %775 = vmatprep.subr.mxu0 0.0
    %776 = vmatpush1.xpose.msra.mxu0 0.0
    %777 = vmatprep.subr.mxu0 0.0
    %778 = vmatpush1.xpose.msra.mxu0 0.0
    %779 = vmatprep.subr.mxu0 0.0
    %780 = vmatpush1.xpose.msra.mxu0 0.0
    %781 = vmatprep.subr.mxu0 0.0
    %782 = vmatpush1.xpose.msra.mxu0 0.0
    %783 = vmatprep.subr.mxu0 0.0
    %784 = vmatpush1.xpose.msra.mxu0 0.0
    %785 = vmatprep.subr.mxu0 0.0
    %786 = vmatpush1.xpose.msra.mxu0 0.0
    %787 = vmatprep.subr.mxu0 0.0
    %788 = vmatpush1.xpose.msra.mxu0 0.0
    %789 = vmatprep.subr.mxu0 0.0
    %790 = vmatpush1.xpose.msra.mxu0 0.0
    %791 = vmatprep.subr.mxu0 0.0
    %792 = vmatpush1.xpose.msra.mxu0 0.0
    %793 = vmatprep.subr.mxu0 0.0
    %794 = vmatpush1.xpose.msra.mxu0 0.0
    %795 = vmatprep.subr.mxu0 0.0
    %796 = vmatpush1.xpose.msra.mxu0 0.0
    %797 = vmatprep.subr.mxu0 0.0
    %798 = vmatpush1.xpose.msra.mxu0 0.0
    %799 = vmatprep.subr.mxu0 0.0
    %800 = vmatpush1.xpose.msra.mxu0 0.0
    %801 = vmatprep.subr.mxu0 0.0
    %802 = vmatpush1.xpose.msra.mxu0 0.0
    %803 = vmatprep.subr.mxu0 0.0
    %804 = vmatpush1.xpose.msra.mxu0 0.0
    %805 = vmatprep.subr.mxu0 0.0
    %806 = vmatpush1.xpose.msra.mxu0 0.0
    %807 = vmatprep.subr.mxu0 0.0
    %808 = vmatpush1.xpose.msra.mxu0 0.0
    %809 = vmatprep.subr.mxu0 0.0
    %810 = vmatpush1.xpose.msra.mxu0 0.0
    %811 = vmatprep.mubr.f32.mxu0 0.0
    %812 = vmatmul.mubr.f32.gmra.mrb[0].mxu0 %v739
    %v813 = vpop.f32.mrb[0].mxu0
    %v814 = vadd.f32 0.0, %v813
    %v815 = vpop.f32.mrb[0].mxu0
    %816 = vmatprep.mubr.f32.mxu0 0.0
    %817 = vmatmul.mubr.f32.gmra.mrb[0].mxu0 %v741
    %v818 = vpop.f32.mrb[0].mxu0
    %v819 = vadd.f32 0.0, %v818
    %v820 = vpop.f32.mrb[0].mxu0
    %821 = vdwg.mxu0
    %v822 = vmul.f32 %v814, 0.35355338
    %v823 = vmul.f32 %v819, 0.35355338
    %v824 = vadd.f32 %v822, %v26
    %v825 = vadd.f32 %v823, %v27
    %v826 = vsel %vm213, %v824, -inf
    %827 = vmax.xlane.f32.xlu0 %v826
    %v828 = vpop.xlane.xlu0 %827
    %v829 = vsel %vm213, %v825, -inf
    %830 = vmax.xlane.f32.xlu0 %v829
    %v831 = vpop.xlane.xlu0 %830
    %v832 = vsub.f32 %v824, %v828
    %v833 = vsub.f32 %v825, %v831
    %v834 = vmul.f32 %v832, 1.442695
    %v835 = vpow.pop %v834
    %v836 = vmul.f32 %v833, 1.442695
    %v837 = vpow.pop %v836
    %v838 = vsel %vm213, %v835, 0.0
    %839 = vadd.xlane.f32.xlu0 %v838
    %v840 = vpop.xlane.xlu0 %839
    %v841 = vsel %vm213, %v837, 0.0
    %842 = vadd.xlane.f32.xlu0 %v841
    %v843 = vpop.xlane.xlu0 %842
    %v844 = vrcp.pop %v840
    %v845 = vrcp.pop %v843
    %v846 = vmul.f32 %v835, %v844
    %v847 = vmul.f32 %v837, %v845
    %848 = vrot.lane.b32.xlu0 %v111, 40
    %v849 = vpop.permute.xlu0 %848
    %850 = vrot.lane.b32.xlu0 %v116, 40
    %v851 = vpop.permute.xlu0 %850
    %v855 = vsel %vm213, %v846, 0
    %v858 = vsel %vm213, %v847, 0
    %860 = vmatprep.subr.mxu0 0.0
    %861 = vmatpush1.msra.mxu0 %v849
    %862 = vmatprep.subr.mxu0 0.0
    %863 = vmatpush1.msra.mxu0 %v851
    %864 = vmatprep.subr.mxu0 0.0
    %865 = vmatpush1.msra.mxu0 0.0
    %866 = vmatprep.subr.mxu0 0.0
    %867 = vmatpush1.msra.mxu0 0.0
    %868 = vmatprep.subr.mxu0 0.0
    %869 = vmatpush1.msra.mxu0 0.0
    %870 = vmatprep.subr.mxu0 0.0
    %871 = vmatpush1.msra.mxu0 0.0
    %872 = vmatprep.subr.mxu0 0.0
    %873 = vmatpush1.msra.mxu0 0.0
    %874 = vmatprep.subr.mxu0 0.0
    %875 = vmatpush1.msra.mxu0 0.0
    %876 = vmatprep.subr.mxu0 0.0
    %877 = vmatpush1.msra.mxu0 0.0
    %878 = vmatprep.subr.mxu0 0.0
    %879 = vmatpush1.msra.mxu0 0.0
    %880 = vmatprep.subr.mxu0 0.0
    %881 = vmatpush1.msra.mxu0 0.0
    %882 = vmatprep.subr.mxu0 0.0
    %883 = vmatpush1.msra.mxu0 0.0
    %884 = vmatprep.subr.mxu0 0.0
    %885 = vmatpush1.msra.mxu0 0.0
    %886 = vmatprep.subr.mxu0 0.0
    %887 = vmatpush1.msra.mxu0 0.0
    %888 = vmatprep.subr.mxu0 0.0
    %889 = vmatpush1.msra.mxu0 0.0
    %890 = vmatprep.subr.mxu0 0.0
    %891 = vmatpush1.msra.mxu0 0.0
    %892 = vmatprep.subr.mxu0 0.0
    %893 = vmatpush1.msra.mxu0 0.0
    %894 = vmatprep.subr.mxu0 0.0
    %895 = vmatpush1.msra.mxu0 0.0
    %896 = vmatprep.subr.mxu0 0.0
    %897 = vmatpush1.msra.mxu0 0.0
    %898 = vmatprep.subr.mxu0 0.0
    %899 = vmatpush1.msra.mxu0 0.0
    %900 = vmatprep.subr.mxu0 0.0
    %901 = vmatpush1.msra.mxu0 0.0
    %902 = vmatprep.subr.mxu0 0.0
    %903 = vmatpush1.msra.mxu0 0.0
    %904 = vmatprep.subr.mxu0 0.0
    %905 = vmatpush1.msra.mxu0 0.0
    %906 = vmatprep.subr.mxu0 0.0
    %907 = vmatpush1.msra.mxu0 0.0
    %908 = vmatprep.subr.mxu0 0.0
    %909 = vmatpush1.msra.mxu0 0.0
    %910 = vmatprep.subr.mxu0 0.0
    %911 = vmatpush1.msra.mxu0 0.0
    %912 = vmatprep.subr.mxu0 0.0
    %913 = vmatpush1.msra.mxu0 0.0
    %914 = vmatprep.subr.mxu0 0.0
    %915 = vmatpush1.msra.mxu0 0.0
    %916 = vmatprep.subr.mxu0 0.0
    %917 = vmatpush1.msra.mxu0 0.0
    %918 = vmatprep.subr.mxu0 0.0
    %919 = vmatpush1.msra.mxu0 0.0
    %920 = vmatprep.subr.mxu0 0.0
    %921 = vmatpush1.msra.mxu0 0.0
    %922 = vmatprep.subr.mxu0 0.0
    %923 = vmatpush1.msra.mxu0 0.0
    %924 = vmatprep.mubr.f32.mxu0 0.0
    %925 = vmatmul.mubr.f32.gmra.mrb[0].mxu0 %v855
    %v926 = vpop.f32.mrb[0].mxu0
    %v927 = vadd.f32 0.0, %v926
    %v928 = vpop.f32.mrb[0].mxu0
    %929 = vmatprep.mubr.f32.mxu0 0.0
    %930 = vmatmul.mubr.f32.gmra.mrb[0].mxu0 %v858
    %v931 = vpop.f32.mrb[0].mxu0
    %v932 = vadd.f32 0.0, %v931
    %v933 = vpop.f32.mrb[0].mxu0
    %934 = vdwg.mxu0
    %937 = vrot.lane.b32.xlu0 %v519, 8
    %v938 = vpop.permute.xlu0 %937
    %939 = vrot.lane.b32.xlu0 %v524, 8
    %v940 = vpop.permute.xlu0 %939
    %945 = vrot.lane.b32.xlu0 %v723, 16
    %v946 = vpop.permute.xlu0 %945
    %947 = vrot.lane.b32.xlu0 %v728, 16
    %v948 = vpop.permute.xlu0 %947
    %953 = vrot.lane.b32.xlu0 %v927, 24
    %v954 = vpop.permute.xlu0 %953
    %955 = vrot.lane.b32.xlu0 %v932, 24
    %v956 = vpop.permute.xlu0 %955
    %v959 = vsel %vm125, %v315, %v938
    %v960 = vsel %vm125, %v320, %v940
    %v961 = vsel %vm213, %v959, %v946
    %v962 = vsel %vm213, %v960, %v948
    %vm963 = vcmask 195584
    %v964 = vsel %vm963, %v961, %v954
    %v965 = vsel %vm963, %v962, %v956
    %970 = vrot.lane.b32.xlu0 %v28, 32
    %v971 = vpop.permute.xlu0 %970
    %972 = vrot.lane.b32.xlu0 %v29, 32
    %v973 = vpop.permute.xlu0 %972
    %974 = vrot.lane.b32.xlu0 %v30, 32
    %v975 = vpop.permute.xlu0 %974
    %976 = vrot.lane.b32.xlu0 %v31, 32
    %v977 = vpop.permute.xlu0 %976
    %983 = vrot.lane.b32.xlu0 %v36, 32
    %v984 = vpop.permute.xlu0 %983
    %v987 = vsel %vm37, %v964, 0
    %v990 = vsel %vm37, %v965, 0
    %992 = vmatprep.subr.mxu0 0.0
    %993 = vmatpush1.msra.mxu0 %v971
    %994 = vmatprep.subr.mxu0 0.0
    %995 = vmatpush1.msra.mxu0 %v973
    %996 = vmatprep.subr.mxu0 0.0
    %997 = vmatpush1.msra.mxu0 %v975
    %998 = vmatprep.subr.mxu0 0.0
    %999 = vmatpush1.msra.mxu0 %v977
    %1000 = vmatprep.subr.mxu0 0.0
    %1001 = vmatpush1.msra.mxu0 0.0
    %1002 = vmatprep.subr.mxu0 0.0
    %1003 = vmatpush1.msra.mxu0 0.0
    %1004 = vmatprep.subr.mxu0 0.0
    %1005 = vmatpush1.msra.mxu0 0.0
    %1006 = vmatprep.subr.mxu0 0.0
    %1007 = vmatpush1.msra.mxu0 0.0
    %1008 = vmatprep.subr.mxu0 0.0
    %1009 = vmatpush1.msra.mxu0 0.0
    %1010 = vmatprep.subr.mxu0 0.0
    %1011 = vmatpush1.msra.mxu0 0.0
    %1012 = vmatprep.subr.mxu0 0.0
    %1013 = vmatpush1.msra.mxu0 0.0
    %1014 = vmatprep.subr.mxu0 0.0
    %1015 = vmatpush1.msra.mxu0 0.0
    %1016 = vmatprep.subr.mxu0 0.0
    %1017 = vmatpush1.msra.mxu0 0.0
    %1018 = vmatprep.subr.mxu0 0.0
    %1019 = vmatpush1.msra.mxu0 0.0
    %1020 = vmatprep.subr.mxu0 0.0
    %1021 = vmatpush1.msra.mxu0 0.0
    %1022 = vmatprep.subr.mxu0 0.0
    %1023 = vmatpush1.msra.mxu0 0.0
    %1024 = vmatprep.subr.mxu0 0.0
    %1025 = vmatpush1.msra.mxu0 0.0
    %1026 = vmatprep.subr.mxu0 0.0
    %1027 = vmatpush1.msra.mxu0 0.0
    %1028 = vmatprep.subr.mxu0 0.0
    %1029 = vmatpush1.msra.mxu0 0.0
    %1030 = vmatprep.subr.mxu0 0.0
    %1031 = vmatpush1.msra.mxu0 0.0
    %1032 = vmatprep.subr.mxu0 0.0
    %1033 = vmatpush1.msra.mxu0 0.0
    %1034 = vmatprep.subr.mxu0 0.0
    %1035 = vmatpush1.msra.mxu0 0.0
    %1036 = vmatprep.subr.mxu0 0.0
    %1037 = vmatpush1.msra.mxu0 0.0
    %1038 = vmatprep.subr.mxu0 0.0
    %1039 = vmatpush1.msra.mxu0 0.0
    %1040 = vmatprep.subr.mxu0 0.0
    %1041 = vmatpush1.msra.mxu0 0.0
    %1042 = vmatprep.subr.mxu0 0.0
    %1043 = vmatpush1.msra.mxu0 0.0
    %1044 = vmatprep.subr.mxu0 0.0
    %1045 = vmatpush1.msra.mxu0 0.0
    %1046 = vmatprep.subr.mxu0 0.0
    %1047 = vmatpush1.msra.mxu0 0.0
    %1048 = vmatprep.subr.mxu0 0.0
    %1049 = vmatpush1.msra.mxu0 0.0
    %1050 = vmatprep.subr.mxu0 0.0
    %1051 = vmatpush1.msra.mxu0 0.0
    %1052 = vmatprep.subr.mxu0 0.0
    %1053 = vmatpush1.msra.mxu0 0.0
    %1054 = vmatprep.subr.mxu0 0.0
    %1055 = vmatpush1.msra.mxu0 0.0
    %1056 = vmatprep.mubr.f32.mxu0 0.0
    %1057 = vmatmul.mubr.f32.gmra.mrb[0].mxu0 %v987
    %v1058 = vpop.f32.mrb[0].mxu0
    %v1059 = vadd.f32 %v984, %v1058
    %v1060 = vpop.f32.mrb[0].mxu0
    %1061 = vmatprep.mubr.f32.mxu0 0.0
    %1062 = vmatmul.mubr.f32.gmra.mrb[0].mxu0 %v990
    %v1063 = vpop.f32.mrb[0].mxu0
    %v1064 = vadd.f32 %v984, %v1063
    %v1065 = vpop.f32.mrb[0].mxu0
    %1066 = vdwg.mxu0
    %v1067 = vadd.f32 %v1059, %v24
    %v1068 = vadd.f32 %v1064, %v25
    %v1069 = vsel %vm37, %v1067, 0.0
    %1070 = vadd.xlane.f32.xlu0 %v1069
    %v1071 = vpop.xlane.xlu0 %1070
    %v1072 = vsel %vm37, %v1068, 0.0
    %1073 = vadd.xlane.f32.xlu0 %v1072
    %v1074 = vpop.xlane.xlu0 %1073
    %v1075 = vrcp.pop 32.0
    %v1076 = vmul.f32 %v1071, %v1075
    %v1077 = vmul.f32 %v1074, %v1075
    %v1078 = vsub.f32 %v1067, %v1076
    %v1079 = vsub.f32 %v1068, %v1077
    %v1080 = vmul.f32 %v1078, %v1078
    %v1081 = vmul.f32 %v1079, %v1079
    %v1082 = vsel %vm37, %v1080, 0.0
    %1083 = vadd.xlane.f32.xlu0 %v1082
    %v1084 = vpop.xlane.xlu0 %1083
    %v1085 = vsel %vm37, %v1081, 0.0
    %1086 = vadd.xlane.f32.xlu0 %v1085
    %v1087 = vpop.xlane.xlu0 %1086
    %v1088 = vmul.f32 %v1084, %v1075
    %v1089 = vmul.f32 %v1087, %v1075
    %v1090 = vadd.f32 %v1088, 1e-12
    %v1091 = vadd.f32 %v1089, 1e-12
    %v1092 = vrsqrt.pop %v1090
    %v1093 = vrsqrt.pop %v1091
    %v1094 = vmul.f32 %v1078, %v1092
    %v1095 = vmul.f32 %v1079, %v1093
    %v1096 = vlaneseq
    %v1097 = vshrl.u32 %v1096, 7
    %v1098 = vsub.s32 1, %v1097
    %v1099 = vrot.slane %v32, %v1098
    %v1100 = vmul.f32 %v1094, %v1099
    %v1101 = vmul.f32 %v1095, %v1099
    %1103 = vrot.lane.b32.xlu0 %v1099, 96
    %v1104 = vpop.permute.xlu0 %1103
    %v1106 = vadd.f32 %v1100, %v1104
    %v1107 = vadd.f32 %v1101, %v1104
    %v1108 = vld [vmem:[%s3] sm:$0xff]
    %v1109 = vld [vmem:[%s3 + $0x8] sm:$0xff]
    %v1110 = vld [vmem:[%s3 + $0x10] sm:$0xff]
    %v1111 = vld [vmem:[%s3 + $0x18] sm:$0xff]
    %v1112 = vlaneseq
    %v1113 = vshrl.u32 %v1112, 7
    %v1114 = vsub.s32 2, %v1113
    %v1115 = vrot.slane %v32, %v1114
    %v1117 = vsel %vm37, %v1106, 0
    %v1120 = vsel %vm37, %v1107, 0
    %1122 = vmatprep.subr.mxu0 0.0
    %1123 = vmatpush1.msra.mxu0 %v1108
    %1124 = vmatprep.subr.mxu0 0.0
    %1125 = vmatpush1.msra.mxu0 %v1109
    %1126 = vmatprep.subr.mxu0 0.0
    %1127 = vmatpush1.msra.mxu0 %v1110
    %1128 = vmatprep.subr.mxu0 0.0
    %1129 = vmatpush1.msra.mxu0 %v1111
    %1130 = vmatprep.subr.mxu0 0.0
    %1131 = vmatpush1.msra.mxu0 0.0
    %1132 = vmatprep.subr.mxu0 0.0
    %1133 = vmatpush1.msra.mxu0 0.0
    %1134 = vmatprep.subr.mxu0 0.0
    %1135 = vmatpush1.msra.mxu0 0.0
    %1136 = vmatprep.subr.mxu0 0.0
    %1137 = vmatpush1.msra.mxu0 0.0
    %1138 = vmatprep.subr.mxu0 0.0
    %1139 = vmatpush1.msra.mxu0 0.0
    %1140 = vmatprep.subr.mxu0 0.0
    %1141 = vmatpush1.msra.mxu0 0.0
    %1142 = vmatprep.subr.mxu0 0.0
    %1143 = vmatpush1.msra.mxu0 0.0
    %1144 = vmatprep.subr.mxu0 0.0
    %1145 = vmatpush1.msra.mxu0 0.0
    %1146 = vmatprep.subr.mxu0 0.0
    %1147 = vmatpush1.msra.mxu0 0.0
    %1148 = vmatprep.subr.mxu0 0.0
    %1149 = vmatpush1.msra.mxu0 0.0
    %1150 = vmatprep.subr.mxu0 0.0
    %1151 = vmatpush1.msra.mxu0 0.0
    %1152 = vmatprep.subr.mxu0 0.0
    %1153 = vmatpush1.msra.mxu0 0.0
    %1154 = vmatprep.subr.mxu0 0.0
    %1155 = vmatpush1.msra.mxu0 0.0
    %1156 = vmatprep.subr.mxu0 0.0
    %1157 = vmatpush1.msra.mxu0 0.0
    %1158 = vmatprep.subr.mxu0 0.0
    %1159 = vmatpush1.msra.mxu0 0.0
    %1160 = vmatprep.subr.mxu0 0.0
    %1161 = vmatpush1.msra.mxu0 0.0
    %1162 = vmatprep.subr.mxu0 0.0
    %1163 = vmatpush1.msra.mxu0 0.0
    %1164 = vmatprep.subr.mxu0 0.0
    %1165 = vmatpush1.msra.mxu0 0.0
    %1166 = vmatprep.subr.mxu0 0.0
    %1167 = vmatpush1.msra.mxu0 0.0
    %1168 = vmatprep.subr.mxu0 0.0
    %1169 = vmatpush1.msra.mxu0 0.0
    %1170 = vmatprep.subr.mxu0 0.0
    %1171 = vmatpush1.msra.mxu0 0.0
    %1172 = vmatprep.subr.mxu0 0.0
    %1173 = vmatpush1.msra.mxu0 0.0
    %1174 = vmatprep.subr.mxu0 0.0
    %1175 = vmatpush1.msra.mxu0 0.0
    %1176 = vmatprep.subr.mxu0 0.0
    %1177 = vmatpush1.msra.mxu0 0.0
    %1178 = vmatprep.subr.mxu0 0.0
    %1179 = vmatpush1.msra.mxu0 0.0
    %1180 = vmatprep.subr.mxu0 0.0
    %1181 = vmatpush1.msra.mxu0 0.0
    %1182 = vmatprep.subr.mxu0 0.0
    %1183 = vmatpush1.msra.mxu0 0.0
    %1184 = vmatprep.subr.mxu0 0.0
    %1185 = vmatpush1.msra.mxu0 0.0
    %1186 = vmatprep.mubr.f32.mxu0 0.0
    %1187 = vmatmul.mubr.f32.gmra.mrb[0].mxu0 %v1117
    %v1188 = vpop.f32.mrb[0].mxu0
    %v1189 = vadd.f32 %v1115, %v1188
    %v1190 = vpop.f32.mrb[0].mxu0
    %1191 = vmatprep.mubr.f32.mxu0 0.0
    %1192 = vmatmul.mubr.f32.gmra.mrb[0].mxu0 %v1120
    %v1193 = vpop.f32.mrb[0].mxu0
    %v1194 = vadd.f32 %v1115, %v1193
    %v1195 = vpop.f32.mrb[0].mxu0
    %1196 = vdwg.mxu0
    %v1197 = vmul.f32 %v1189, 0.5
    %v1198 = vmul.f32 %v1194, 0.5
    %v1199 = vrcp.pop 1.4142135
    %v1200 = vmul.f32 %v1189, %v1199
    %v1201 = vmul.f32 %v1194, %v1199
    %v1202 = verf.f32.pop %v1200
    %v1203 = verf.f32.pop %v1201
    %v1204 = vadd.f32 %v1202, 1.0
    %v1205 = vadd.f32 %v1203, 1.0
    %v1206 = vmul.f32 %v1197, %v1204
    %v1207 = vmul.f32 %v1198, %v1205
    %v1208 = vld [vmem:[%s4] sm:$0xff]
    %v1209 = vld [vmem:[%s4 + $0x8] sm:$0xff]
    %v1210 = vld [vmem:[%s4 + $0x10] sm:$0xff]
    %v1211 = vld [vmem:[%s4 + $0x18] sm:$0xff]
    %v1212 = vld [vmem:[%s4 + $0x20] sm:$0xff]
    %v1213 = vld [vmem:[%s4 + $0x28] sm:$0xff]
    %v1214 = vld [vmem:[%s4 + $0x30] sm:$0xff]
    %v1215 = vld [vmem:[%s4 + $0x38] sm:$0xff]
    %1217 = vrot.lane.b32.xlu0 %v1115, 64
    %v1218 = vpop.permute.xlu0 %1217
    %vm1220 = vcmask 523264
    %v1222 = vsel %vm1220, %v1206, 0
    %v1225 = vsel %vm1220, %v1207, 0
    %1227 = vmatprep.subr.mxu0 0.0
    %1228 = vmatpush1.msra.mxu0 %v1208
    %1229 = vmatprep.subr.mxu0 0.0
    %1230 = vmatpush1.msra.mxu0 %v1209
    %1231 = vmatprep.subr.mxu0 0.0
    %1232 = vmatpush1.msra.mxu0 %v1210
    %1233 = vmatprep.subr.mxu0 0.0
    %1234 = vmatpush1.msra.mxu0 %v1211
    %1235 = vmatprep.subr.mxu0 0.0
    %1236 = vmatpush1.msra.mxu0 %v1212
    %1237 = vmatprep.subr.mxu0 0.0
    %1238 = vmatpush1.msra.mxu0 %v1213
    %1239 = vmatprep.subr.mxu0 0.0
    %1240 = vmatpush1.msra.mxu0 %v1214
    %1241 = vmatprep.subr.mxu0 0.0
    %1242 = vmatpush1.msra.mxu0 %v1215
    %1243 = vmatprep.subr.mxu0 0.0
    %1244 = vmatpush1.msra.mxu0 0.0
    %1245 = vmatprep.subr.mxu0 0.0
    %1246 = vmatpush1.msra.mxu0 0.0
    %1247 = vmatprep.subr.mxu0 0.0
    %1248 = vmatpush1.msra.mxu0 0.0
    %1249 = vmatprep.subr.mxu0 0.0
    %1250 = vmatpush1.msra.mxu0 0.0
    %1251 = vmatprep.subr.mxu0 0.0
    %1252 = vmatpush1.msra.mxu0 0.0
    %1253 = vmatprep.subr.mxu0 0.0
    %1254 = vmatpush1.msra.mxu0 0.0
    %1255 = vmatprep.subr.mxu0 0.0
    %1256 = vmatpush1.msra.mxu0 0.0
    %1257 = vmatprep.subr.mxu0 0.0
    %1258 = vmatpush1.msra.mxu0 0.0
    %1259 = vmatprep.subr.mxu0 0.0
    %1260 = vmatpush1.msra.mxu0 0.0
    %1261 = vmatprep.subr.mxu0 0.0
    %1262 = vmatpush1.msra.mxu0 0.0
    %1263 = vmatprep.subr.mxu0 0.0
    %1264 = vmatpush1.msra.mxu0 0.0
    %1265 = vmatprep.subr.mxu0 0.0
    %1266 = vmatpush1.msra.mxu0 0.0
    %1267 = vmatprep.subr.mxu0 0.0
    %1268 = vmatpush1.msra.mxu0 0.0
    %1269 = vmatprep.subr.mxu0 0.0
    %1270 = vmatpush1.msra.mxu0 0.0
    %1271 = vmatprep.subr.mxu0 0.0
    %1272 = vmatpush1.msra.mxu0 0.0
    %1273 = vmatprep.subr.mxu0 0.0
    %1274 = vmatpush1.msra.mxu0 0.0
    %1275 = vmatprep.subr.mxu0 0.0
    %1276 = vmatpush1.msra.mxu0 0.0
    %1277 = vmatprep.subr.mxu0 0.0
    %1278 = vmatpush1.msra.mxu0 0.0
    %1279 = vmatprep.subr.mxu0 0.0
    %1280 = vmatpush1.msra.mxu0 0.0
    %1281 = vmatprep.subr.mxu0 0.0
    %1282 = vmatpush1.msra.mxu0 0.0
    %1283 = vmatprep.subr.mxu0 0.0
    %1284 = vmatpush1.msra.mxu0 0.0
    %1285 = vmatprep.subr.mxu0 0.0
    %1286 = vmatpush1.msra.mxu0 0.0
    %1287 = vmatprep.subr.mxu0 0.0
    %1288 = vmatpush1.msra.mxu0 0.0
    %1289 = vmatprep.subr.mxu0 0.0
    %1290 = vmatpush1.msra.mxu0 0.0
    %1291 = vmatprep.mubr.f32.mxu0 0.0
    %1292 = vmatmul.mubr.f32.gmra.mrb[0].mxu0 %v1222
    %v1293 = vpop.f32.mrb[0].mxu0
    %v1294 = vadd.f32 %v1218, %v1293
    %v1295 = vpop.f32.mrb[0].mxu0
    %1296 = vmatprep.mubr.f32.mxu0 0.0
    %1297 = vmatmul.mubr.f32.gmra.mrb[0].mxu0 %v1225
    %v1298 = vpop.f32.mrb[0].mxu0
    %v1299 = vadd.f32 %v1218, %v1298
    %v1300 = vpop.f32.mrb[0].mxu0
    %1301 = vdwg.mxu0
    %v1302 = vadd.f32 %v1294, %v1106
    %v1303 = vadd.f32 %v1299, %v1107
    %v1304 = vsel %vm37, %v1302, 0.0
    %1305 = vadd.xlane.f32.xlu0 %v1304
    %v1306 = vpop.xlane.xlu0 %1305
    %v1307 = vsel %vm37, %v1303, 0.0
    %1308 = vadd.xlane.f32.xlu0 %v1307
    %v1309 = vpop.xlane.xlu0 %1308
    %v1310 = vmul.f32 %v1306, %v1075
    %v1311 = vmul.f32 %v1309, %v1075
    %v1312 = vsub.f32 %v1302, %v1310
    %v1313 = vsub.f32 %v1303, %v1311
    %v1314 = vmul.f32 %v1312, %v1312
    %v1315 = vmul.f32 %v1313, %v1313
    %v1316 = vsel %vm37, %v1314, 0.0
    %1317 = vadd.xlane.f32.xlu0 %v1316
    %v1318 = vpop.xlane.xlu0 %1317
    %v1319 = vsel %vm37, %v1315, 0.0
    %1320 = vadd.xlane.f32.xlu0 %v1319
    %v1321 = vpop.xlane.xlu0 %1320
    %v1322 = vmul.f32 %v1318, %v1075
    %v1323 = vmul.f32 %v1321, %v1075
    %v1324 = vadd.f32 %v1322, 1e-12
    %v1325 = vadd.f32 %v1323, 1e-12
    %v1326 = vrsqrt.pop %v1324
    %v1327 = vrsqrt.pop %v1325
    %v1328 = vmul.f32 %v1312, %v1326
    %v1329 = vmul.f32 %v1313, %v1327
    %1330 = vrot.lane.b32.xlu0 %v1099, 64
    %v1331 = vpop.permute.xlu0 %1330
    %v1333 = vmul.f32 %v1328, %v1331
    %v1334 = vmul.f32 %v1329, %v1331
    %1335 = vrot.lane.b32.xlu0 %v1099, 32
    %v1336 = vpop.permute.xlu0 %1335
    %v1338 = vadd.f32 %v1333, %v1336
    %v1339 = vadd.f32 %v1334, %v1336
    %1340 = vst.msk [vmem:[#allocation2] sm:$0xff] %vm37, %v1338
    %1341 = vst.msk [vmem:[#allocation2 + $0x8] sm:$0xff] %vm37, %v1339
    // Predicated region
    $region26: #{tpu_custom_call.1} parent=1 // pred_check
      _
    $region27: #{tpu_custom_call.1} parent=1 // pred_check_branch
      %1343 = sbr.rel (0) target = $region29
    $region28: #{tpu_custom_call.1} parent=1 // pred_region
      %s1345 = ssub.s32 256, 256
      %1346 = vsyncadd [#allocation3], %s1345
      %s1347 = sshll.u32 [#allocation2], 4
      %s1348 = int_to_ptr.vmem [resolvable:$true] %s1347
      %1353 = dma.vmem_to_hbm [thread:$0]  %s1348, 256, %s6, [#allocation3], 128, 128, 8
    $region29: #{tpu_custom_call.1} parent=1 // pred_fallthru
      _
    // Predicated region
    $region30: #{tpu_custom_call.1} parent=1 // pred_check
      _
    $region31: #{tpu_custom_call.1} parent=1 // pred_check_branch
      %1355 = sbr.rel (0) target = $region33
    $region32: #{tpu_custom_call.1} parent=1 // pred_region
      %1356 = dma.done [#allocation3], 256
    $region33: #{tpu_custom_call.1} parent=1 // pred_fallthru
      _
    %1357 = vsyncpa [#allocation3], 1

</llo_original>
